<compile_context>
chip_gen: v7x
topology: tpu7x:2x2x1
jax: 0.10.0
libtpu: 0.0.40
codegen_flags: <defaults>
</compile_context>

<pallas_src>
import functools
from typing import List

import jax
import jax.numpy as jnp
from jax.experimental import pallas as pl
from jax.experimental.pallas import tpu as pltpu


# ----------------------------- parameter init ------------------------------ #

def xavier_uniform(key, fan_in, fan_out, dtype=jnp.float32):
    """Matches torch.nn.init.xavier_uniform_ (gain=1) for a Linear weight."""
    bound = (6.0 / (fan_in + fan_out)) ** 0.5
    # Stored as (in, out) so the kernel computes x @ W.
    return jax.random.uniform(key, (fan_in, fan_out), dtype=dtype,
                              minval=-bound, maxval=bound)


def init_params(key,
                input_dim: int,
                encoder_layer_dims: List[int],
                bottleneck_dim: int,
                decoder_layer_dims: List[int],
                output_dim: int,
                distribution: str):
    """Returns (hidden_params, head_params) flat lists of (W, b) with W:(in,out)."""
    dims = [input_dim] + list(encoder_layer_dims) + [bottleneck_dim] + list(decoder_layer_dims)
    hidden = []
    for i in range(len(dims) - 1):
        key, sub = jax.random.split(key)
        w = xavier_uniform(sub, dims[i], dims[i + 1])
        b = jnp.zeros((1, dims[i + 1]), jnp.float32)
        hidden.append((w, b))
    last_dim = dims[-1]
    n_heads = 3 if distribution.upper() == "ZINB" else 2
    heads = []
    for _ in range(n_heads):
        key, sub = jax.random.split(key)
        w = xavier_uniform(sub, last_dim, output_dim)
        b = jnp.zeros((1, output_dim), jnp.float32)
        heads.append((w, b))
    return hidden, heads


# ------------------------------ padding utils ------------------------------- #

def _round_up(n: int, m: int) -> int:
    return ((n + m - 1) // m) * m


def _pad2(a, rows: int, cols: int):
    return jnp.pad(a, ((0, rows - a.shape[0]), (0, cols - a.shape[1])))


def _pick_batch_tile(B: int) -> int:
    B = max(B, 1)
    if B <= 256:
        return _round_up(B, 8)   # small batch: no padded rows, single tile
    return 256                   # large batch: >=2 tiles => pipelining / megacore


# --------------------------------- kernel ---------------------------------- #

def _softplus(x):
    # Numerically stable softplus: log(1 + exp(x)).
    return jnp.maximum(x, 0.0) + jnp.log1p(jnp.exp(-jnp.abs(x)))


def _sigmoid_via_tanh(x):
    # sigmoid(x) == 0.5 * (1 + tanh(x / 2)); a single EUP transcendental.
    return 0.5 * (jnp.tanh(0.5 * x) + 1.0)


def _dca_kernel(n_hidden: int, n_heads: int, od_pad: int, compute_dtype, *refs):
    """refs = [x, W0, b0, ..., W_{n-1}, b_{n-1}, W_heads, b_heads,
               out_mu, out_theta(, out_pi)]."""
    n_params = 2 * n_hidden + 2
    x_ref = refs[0]
    p = refs[1:1 + n_params]
    out_refs = refs[1 + n_params:1 + n_params + n_heads]

    # x is already cast/padded to compute_dtype by the wrapper.
    h = x_ref[...]

    # Encoder + bottleneck + decoder_base: Linear -> ReLU (dropout_rate=0 => no dropout)
    for i in range(n_hidden):
        w = p[2 * i][...]
        b = p[2 * i + 1][...]                                   # f32 bias
        a = jnp.dot(h, w, preferred_element_type=jnp.float32) + b
        h = jnp.maximum(a, 0.0).astype(compute_dtype)

    # Fused heads: one MXU matmul for mean|disp(|pi), f32 accumulation.
    wh = p[2 * n_hidden][...]
    bh = p[2 * n_hidden + 1][...]
    z = jnp.dot(h, wh, preferred_element_type=jnp.float32) + bh  # (bt, n_heads*od_pad)

    # Per-head lane-dense epilogues written directly to their own output refs.
    for k in range(n_heads):
        zk = z[:, k * od_pad:(k + 1) * od_pad]
        if k < 2:
            # mean / dispersion heads: softplus + 1e-6
            out_refs[k][...] = (_softplus(zk) + 1e-6).astype(out_refs[k].dtype)
        else:
            # pi head: sigmoid
            out_refs[k][...] = _sigmoid_via_tanh(zk).astype(out_refs[k].dtype)


# -------------------------------- wrapper ----------------------------------- #

def count_autoencoder_forward(x, hidden_params, head_params, distribution="NB",
                              compute_dtype=jnp.float32, batch_tile=None):
    """Runs the fused CountAutoencoder forward pass in a single pallas_call.

    Returns (mu, theta) for NB or (mu, theta, pi) for ZINB, all float32.
    `compute_dtype=jnp.bfloat16` feeds the MXU in its native dtype (f32 accumulate).
    """
    is_zinb = distribution.upper() == "ZINB"
    n_heads = 3 if is_zinb else 2
    n_hidden = len(hidden_params)
    B, in_dim = x.shape
    output_dim = head_params[0][0].shape[1]

    # ---- pad every feature dim to a multiple of 128 (lane-dense layout) ---- #
    dims = [in_dim] + [w.shape[1] for (w, _) in hidden_params]
    dims_p = [_round_up(d, 128) for d in dims]
    od_pad = _round_up(output_dim, 128)

    flat_params = []
    for i, (w, b) in enumerate(hidden_params):
        flat_params.append(_pad2(w, dims_p[i], dims_p[i + 1]).astype(compute_dtype))
        flat_params.append(_pad2(b, 1, dims_p[i + 1]).astype(jnp.float32))

    last_p = dims_p[-1]
    w_heads = jnp.concatenate(
        [_pad2(w, last_p, od_pad) for (w, _) in head_params],
        axis=1).astype(compute_dtype)                            # (last_p, n_heads*od_pad)
    b_heads = jnp.concatenate(
        [_pad2(b, 1, od_pad) for (_, b) in head_params],
        axis=1).astype(jnp.float32)                              # (1, n_heads*od_pad)
    flat_params += [w_heads, b_heads]

    # ---- adaptive batch tile + batch/feature padding ---- #
    if batch_tile is None:
        batch_tile = _pick_batch_tile(B)
    B_pad = _round_up(max(B, 1), batch_tile)
    x_p = jnp.pad(x.astype(compute_dtype),
                  ((0, B_pad - B), (0, dims_p[0] - in_dim)))
    n_tiles = B_pad // batch_tile
    grid = (n_tiles,)

    # BlockSpecs: x / outputs tiled over batch; weights resident (constant index_map).
    x_spec = pl.BlockSpec((batch_tile, dims_p[0]), lambda i: (i, 0))

    def _param_specs(single_buffer: bool):
        if single_buffer:
            # Constant index_map => no need to double-buffer the resident weights.
            return [pl.BlockSpec(a.shape, lambda i: (0, 0),
                                 pipeline_mode=pl.Buffered(1))
                    for a in flat_params]
        return [pl.BlockSpec(a.shape, lambda i: (0, 0)) for a in flat_params]

    out_shapes = tuple(jax.ShapeDtypeStruct((B_pad, od_pad), jnp.float32)
                       for _ in range(n_heads))
    out_specs = [pl.BlockSpec((batch_tile, od_pad), lambda i: (i, 0))
                 for _ in range(n_heads)]

    # VMEM budget: resident params (conservatively x2) + double-buffered x/out
    # blocks + headroom; clamp to [16 MiB, 64 MiB] (v7x physical ceiling).
    itemsize = jnp.dtype(compute_dtype).itemsize
    param_bytes = sum(int(a.size) * a.dtype.itemsize for a in flat_params)
    x_block_bytes = batch_tile * dims_p[0] * itemsize
    out_block_bytes = n_heads * batch_tile * od_pad * 4
    vmem_limit = 2 * param_bytes + 2 * (x_block_bytes + out_block_bytes) + (8 << 20)
    vmem_limit = int(min(max(vmem_limit, 16 << 20), 64 << 20))

    # Megacore: on v7x shard the batch grid across both TensorCores.
    try:
        dev_kind = jax.devices()[0].device_kind.lower()
    except Exception:
        dev_kind = ""
    if "v7" in dev_kind and n_tiles >= 2 and n_tiles % 2 == 0:
        dim_sem = (pltpu.CORE_PARALLEL,)
    else:
        dim_sem = ("parallel",)

    kernel = functools.partial(_dca_kernel, n_hidden, n_heads, od_pad, compute_dtype)

    def _call(single_buffer_params: bool):
        return pl.pallas_call(
            kernel,
            out_shape=out_shapes,
            grid_spec=pltpu.PrefetchScalarGridSpec(
                num_scalar_prefetch=0,
                grid=grid,
                in_specs=[x_spec] + _param_specs(single_buffer_params),
                out_specs=out_specs,
            ),
            compiler_params=pltpu.CompilerParams(
                dimension_semantics=dim_sem,
                vmem_limit_bytes=vmem_limit),
        )(x_p, *flat_params)

    try:
        outs = _call(True)
    except Exception:
        # Fallback: if this toolchain rejects Buffered(1), use default buffering.
        outs = _call(False)

    # Strip batch / feature padding (no wide-slab re-slicing; per-head already split).
    return tuple(o[:B, :output_dim] for o in outs)


# ------------------------- pure-JAX reference ------------------------------- #

def reference_forward(x, hidden_params, head_params, distribution="NB"):
    h = x.astype(jnp.float32)
    for w, b in hidden_params:
        h = jnp.maximum(h @ w + b, 0.0)
    mu = jax.nn.softplus(h @ head_params[0][0] + head_params[0][1]) + 1e-6
    theta = jax.nn.softplus(h @ head_params[1][0] + head_params[1][1]) + 1e-6
    if distribution.upper() == "ZINB":
        pi = jax.nn.sigmoid(h @ head_params[2][0] + head_params[2][1])
        return mu, theta, pi
    return mu, theta


# ---------------------------------- main ------------------------------------ #

if __name__ == "__main__":
    # Small, forward-consistent config.
    batch = 16
    input_dim = 32
    encoder_layer_dims = [64, 32]
    bottleneck_dim = 16
    decoder_layer_dims = [32, 64]
    output_dim = 32

    key = jax.random.PRNGKey(0)
    key, xkey = jax.random.split(key)
    x = jax.random.normal(xkey, (batch, input_dim), jnp.float32)

    for distribution in ("ZINB", "NB"):
        hidden_params, head_params = init_params(
            key, input_dim, encoder_layer_dims, bottleneck_dim,
            decoder_layer_dims, output_dim, distribution)

        refs = reference_forward(x, hidden_params, head_params, distribution)

        # f32 matmul path: matches the reference tightly.
        outs = count_autoencoder_forward(x, hidden_params, head_params,
                                         distribution=distribution,
                                         compute_dtype=jnp.float32)
        outs = jax.block_until_ready(outs)
        assert len(outs) == len(refs)
        for o, r in zip(outs, refs):
            assert o.shape == r.shape, (o.shape, r.shape)
            assert o.dtype == jnp.float32
            assert jnp.allclose(o, r, atol=1e-5, rtol=1e-5), \
                f"f32 mismatch vs reference ({distribution})"

        # bf16 matmul path (MXU-native inputs, f32 accumulate): relaxed tolerance.
        outs_bf16 = count_autoencoder_forward(x, hidden_params, head_params,
                                              distribution=distribution,
                                              compute_dtype=jnp.bfloat16)
        outs_bf16 = jax.block_until_ready(outs_bf16)
        for o, r in zip(outs_bf16, refs):
            assert o.shape == r.shape
            assert o.dtype == jnp.float32
            assert jnp.allclose(o, r, atol=5e-2, rtol=5e-2), \
                f"bf16 mismatch vs reference ({distribution})"

    print("KERNEL_OK")
</pallas_src>

<mosaic_0001>
module attributes {stable_mosaic.version = 11 : i64} {
  func.func @_dca_kernel(%arg0: i32, %arg1: memref<16x128xf32, #tpu.memory_space<vmem>>, %arg2: memref<128x128xf32, #tpu.memory_space<vmem>>, %arg3: memref<1x128xf32, #tpu.memory_space<vmem>>, %arg4: memref<128x128xf32, #tpu.memory_space<vmem>>, %arg5: memref<1x128xf32, #tpu.memory_space<vmem>>, %arg6: memref<128x128xf32, #tpu.memory_space<vmem>>, %arg7: memref<1x128xf32, #tpu.memory_space<vmem>>, %arg8: memref<128x128xf32, #tpu.memory_space<vmem>>, %arg9: memref<1x128xf32, #tpu.memory_space<vmem>>, %arg10: memref<128x128xf32, #tpu.memory_space<vmem>>, %arg11: memref<1x128xf32, #tpu.memory_space<vmem>>, %arg12: memref<128x384xf32, #tpu.memory_space<vmem>>, %arg13: memref<1x384xf32, #tpu.memory_space<vmem>>, %arg14: memref<16x128xf32, #tpu.memory_space<vmem>>, %arg15: memref<16x128xf32, #tpu.memory_space<vmem>>, %arg16: memref<16x128xf32, #tpu.memory_space<vmem>>) attributes {dimension_semantics = [#tpu.dimension_semantics<parallel>], iteration_bounds = array<i64: 1>, scalar_prefetch = 0 : i64, scratch_operands = 0 : i64, tpu.core_type = #tpu.core_type<tc>, window_params = [{transform_indices = @transform_0, window_bounds = array<i64: 16, 128>}, {pipeline_mode = #tpu.pipeline_mode<synchronous>, transform_indices = @transform_1, window_bounds = array<i64: 128, 128>}, {pipeline_mode = #tpu.pipeline_mode<synchronous>, transform_indices = @transform_2, window_bounds = array<i64: 1, 128>}, {pipeline_mode = #tpu.pipeline_mode<synchronous>, transform_indices = @transform_3, window_bounds = array<i64: 128, 128>}, {pipeline_mode = #tpu.pipeline_mode<synchronous>, transform_indices = @transform_4, window_bounds = array<i64: 1, 128>}, {pipeline_mode = #tpu.pipeline_mode<synchronous>, transform_indices = @transform_5, window_bounds = array<i64: 128, 128>}, {pipeline_mode = #tpu.pipeline_mode<synchronous>, transform_indices = @transform_6, window_bounds = array<i64: 1, 128>}, {pipeline_mode = #tpu.pipeline_mode<synchronous>, transform_indices = @transform_7, window_bounds = array<i64: 128, 128>}, {pipeline_mode = #tpu.pipeline_mode<synchronous>, transform_indices = @transform_8, window_bounds = array<i64: 1, 128>}, {pipeline_mode = #tpu.pipeline_mode<synchronous>, transform_indices = @transform_9, window_bounds = array<i64: 128, 128>}, {pipeline_mode = #tpu.pipeline_mode<synchronous>, transform_indices = @transform_10, window_bounds = array<i64: 1, 128>}, {pipeline_mode = #tpu.pipeline_mode<synchronous>, transform_indices = @transform_11, window_bounds = array<i64: 128, 384>}, {pipeline_mode = #tpu.pipeline_mode<synchronous>, transform_indices = @transform_12, window_bounds = array<i64: 1, 384>}, {transform_indices = @transform_13, window_bounds = array<i64: 16, 128>}, {transform_indices = @transform_14, window_bounds = array<i64: 16, 128>}, {transform_indices = @transform_15, window_bounds = array<i64: 16, 128>}]} {
    %c0 = arith.constant 0 : index
    %c0_0 = arith.constant 0 : index
    %0 = vector.load %arg1[%c0, %c0_0] : memref<16x128xf32, #tpu.memory_space<vmem>>, vector<16x128xf32>
    %c0_1 = arith.constant 0 : index
    %c0_2 = arith.constant 0 : index
    %1 = vector.load %arg2[%c0_1, %c0_2] : memref<128x128xf32, #tpu.memory_space<vmem>>, vector<128x128xf32>
    %c0_3 = arith.constant 0 : index
    %c0_4 = arith.constant 0 : index
    %2 = vector.load %arg3[%c0_3, %c0_4] : memref<1x128xf32, #tpu.memory_space<vmem>>, vector<1x128xf32>
    %cst = arith.constant dense<0.000000e+00> : vector<16x128xf32>
    %3 = tpu.matmul %0, %1, %cst {dimension_numbers = #tpu.dot_dimension_numbers<[1], [0], [0], [1], [0, 0, 1, 1], [], []>} : vector<16x128xf32>, vector<128x128xf32>, vector<16x128xf32> -> vector<16x128xf32>
    %4 = vector.broadcast %2 : vector<1x128xf32> to vector<16x128xf32>
    %5 = arith.addf %3, %4 : vector<16x128xf32>
    %cst_5 = arith.constant 0.000000e+00 : f32
    %6 = vector.broadcast %cst_5 : f32 to vector<16x128xf32>
    %7 = arith.maximumf %5, %6 : vector<16x128xf32>
    %c0_6 = arith.constant 0 : index
    %c0_7 = arith.constant 0 : index
    %8 = vector.load %arg4[%c0_6, %c0_7] : memref<128x128xf32, #tpu.memory_space<vmem>>, vector<128x128xf32>
    %c0_8 = arith.constant 0 : index
    %c0_9 = arith.constant 0 : index
    %9 = vector.load %arg5[%c0_8, %c0_9] : memref<1x128xf32, #tpu.memory_space<vmem>>, vector<1x128xf32>
    %cst_10 = arith.constant dense<0.000000e+00> : vector<16x128xf32>
    %10 = tpu.matmul %7, %8, %cst_10 {dimension_numbers = #tpu.dot_dimension_numbers<[1], [0], [0], [1], [0, 0, 1, 1], [], []>} : vector<16x128xf32>, vector<128x128xf32>, vector<16x128xf32> -> vector<16x128xf32>
    %11 = vector.broadcast %9 : vector<1x128xf32> to vector<16x128xf32>
    %12 = arith.addf %10, %11 : vector<16x128xf32>
    %cst_11 = arith.constant 0.000000e+00 : f32
    %13 = vector.broadcast %cst_11 : f32 to vector<16x128xf32>
    %14 = arith.maximumf %12, %13 : vector<16x128xf32>
    %c0_12 = arith.constant 0 : index
    %c0_13 = arith.constant 0 : index
    %15 = vector.load %arg6[%c0_12, %c0_13] : memref<128x128xf32, #tpu.memory_space<vmem>>, vector<128x128xf32>
    %c0_14 = arith.constant 0 : index
    %c0_15 = arith.constant 0 : index
    %16 = vector.load %arg7[%c0_14, %c0_15] : memref<1x128xf32, #tpu.memory_space<vmem>>, vector<1x128xf32>
    %cst_16 = arith.constant dense<0.000000e+00> : vector<16x128xf32>
    %17 = tpu.matmul %14, %15, %cst_16 {dimension_numbers = #tpu.dot_dimension_numbers<[1], [0], [0], [1], [0, 0, 1, 1], [], []>} : vector<16x128xf32>, vector<128x128xf32>, vector<16x128xf32> -> vector<16x128xf32>
    %18 = vector.broadcast %16 : vector<1x128xf32> to vector<16x128xf32>
    %19 = arith.addf %17, %18 : vector<16x128xf32>
    %cst_17 = arith.constant 0.000000e+00 : f32
    %20 = vector.broadcast %cst_17 : f32 to vector<16x128xf32>
    %21 = arith.maximumf %19, %20 : vector<16x128xf32>
    %c0_18 = arith.constant 0 : index
    %c0_19 = arith.constant 0 : index
    %22 = vector.load %arg8[%c0_18, %c0_19] : memref<128x128xf32, #tpu.memory_space<vmem>>, vector<128x128xf32>
    %c0_20 = arith.constant 0 : index
    %c0_21 = arith.constant 0 : index
    %23 = vector.load %arg9[%c0_20, %c0_21] : memref<1x128xf32, #tpu.memory_space<vmem>>, vector<1x128xf32>
    %cst_22 = arith.constant dense<0.000000e+00> : vector<16x128xf32>
    %24 = tpu.matmul %21, %22, %cst_22 {dimension_numbers = #tpu.dot_dimension_numbers<[1], [0], [0], [1], [0, 0, 1, 1], [], []>} : vector<16x128xf32>, vector<128x128xf32>, vector<16x128xf32> -> vector<16x128xf32>
    %25 = vector.broadcast %23 : vector<1x128xf32> to vector<16x128xf32>
    %26 = arith.addf %24, %25 : vector<16x128xf32>
    %cst_23 = arith.constant 0.000000e+00 : f32
    %27 = vector.broadcast %cst_23 : f32 to vector<16x128xf32>
    %28 = arith.maximumf %26, %27 : vector<16x128xf32>
    %c0_24 = arith.constant 0 : index
    %c0_25 = arith.constant 0 : index
    %29 = vector.load %arg10[%c0_24, %c0_25] : memref<128x128xf32, #tpu.memory_space<vmem>>, vector<128x128xf32>
    %c0_26 = arith.constant 0 : index
    %c0_27 = arith.constant 0 : index
    %30 = vector.load %arg11[%c0_26, %c0_27] : memref<1x128xf32, #tpu.memory_space<vmem>>, vector<1x128xf32>
    %cst_28 = arith.constant dense<0.000000e+00> : vector<16x128xf32>
    %31 = tpu.matmul %28, %29, %cst_28 {dimension_numbers = #tpu.dot_dimension_numbers<[1], [0], [0], [1], [0, 0, 1, 1], [], []>} : vector<16x128xf32>, vector<128x128xf32>, vector<16x128xf32> -> vector<16x128xf32>
    %32 = vector.broadcast %30 : vector<1x128xf32> to vector<16x128xf32>
    %33 = arith.addf %31, %32 : vector<16x128xf32>
    %cst_29 = arith.constant 0.000000e+00 : f32
    %34 = vector.broadcast %cst_29 : f32 to vector<16x128xf32>
    %35 = arith.maximumf %33, %34 : vector<16x128xf32>
    %c0_30 = arith.constant 0 : index
    %c0_31 = arith.constant 0 : index
    %36 = vector.load %arg12[%c0_30, %c0_31] : memref<128x384xf32, #tpu.memory_space<vmem>>, vector<128x384xf32>
    %c0_32 = arith.constant 0 : index
    %c0_33 = arith.constant 0 : index
    %37 = vector.load %arg13[%c0_32, %c0_33] : memref<1x384xf32, #tpu.memory_space<vmem>>, vector<1x384xf32>
    %cst_34 = arith.constant dense<0.000000e+00> : vector<16x384xf32>
    %38 = tpu.matmul %35, %36, %cst_34 {dimension_numbers = #tpu.dot_dimension_numbers<[1], [0], [0], [1], [0, 0, 1, 1], [], []>} : vector<16x128xf32>, vector<128x384xf32>, vector<16x384xf32> -> vector<16x384xf32>
    %39 = vector.broadcast %37 : vector<1x384xf32> to vector<16x384xf32>
    %40 = arith.addf %38, %39 : vector<16x384xf32>
    %41 = vector.extract_strided_slice %40 {offsets = [0, 0], sizes = [16, 128], strides = [1, 1]} : vector<16x384xf32> to vector<16x128xf32>
    %cst_35 = arith.constant 0.000000e+00 : f32
    %42 = vector.broadcast %cst_35 : f32 to vector<16x128xf32>
    %43 = arith.maximumf %41, %42 : vector<16x128xf32>
    %44 = math.absf %41 : vector<16x128xf32>
    %cst_36 = arith.constant 0.000000e+00 : f32
    %45 = vector.broadcast %cst_36 : f32 to vector<16x128xf32>
    %46 = arith.subf %45, %44 : vector<16x128xf32>
    %47 = math.exp %46 : vector<16x128xf32>
    %48 = math.log1p %47 : vector<16x128xf32>
    %49 = arith.addf %43, %48 : vector<16x128xf32>
    %cst_37 = arith.constant 9.99999997E-7 : f32
    %50 = vector.broadcast %cst_37 : f32 to vector<16x128xf32>
    %51 = arith.addf %49, %50 : vector<16x128xf32>
    %c0_38 = arith.constant 0 : index
    %c0_39 = arith.constant 0 : index
    %52 = vector.load %arg14[%c0_38, %c0_39] : memref<16x128xf32, #tpu.memory_space<vmem>>, vector<16x128xf32>
    tpu.vector_store %arg14[%c0_38, %c0_39], %51 {strides = array<i32>} : memref<16x128xf32, #tpu.memory_space<vmem>>, vector<16x128xf32>,
    %53 = vector.extract_strided_slice %40 {offsets = [0, 128], sizes = [16, 128], strides = [1, 1]} : vector<16x384xf32> to vector<16x128xf32>
    %cst_40 = arith.constant 0.000000e+00 : f32
    %54 = vector.broadcast %cst_40 : f32 to vector<16x128xf32>
    %55 = arith.maximumf %53, %54 : vector<16x128xf32>
    %56 = math.absf %53 : vector<16x128xf32>
    %cst_41 = arith.constant 0.000000e+00 : f32
    %57 = vector.broadcast %cst_41 : f32 to vector<16x128xf32>
    %58 = arith.subf %57, %56 : vector<16x128xf32>
    %59 = math.exp %58 : vector<16x128xf32>
    %60 = math.log1p %59 : vector<16x128xf32>
    %61 = arith.addf %55, %60 : vector<16x128xf32>
    %cst_42 = arith.constant 9.99999997E-7 : f32
    %62 = vector.broadcast %cst_42 : f32 to vector<16x128xf32>
    %63 = arith.addf %61, %62 : vector<16x128xf32>
    %c0_43 = arith.constant 0 : index
    %c0_44 = arith.constant 0 : index
    %64 = vector.load %arg15[%c0_43, %c0_44] : memref<16x128xf32, #tpu.memory_space<vmem>>, vector<16x128xf32>
    tpu.vector_store %arg15[%c0_43, %c0_44], %63 {strides = array<i32>} : memref<16x128xf32, #tpu.memory_space<vmem>>, vector<16x128xf32>,
    %65 = vector.extract_strided_slice %40 {offsets = [0, 256], sizes = [16, 128], strides = [1, 1]} : vector<16x384xf32> to vector<16x128xf32>
    %cst_45 = arith.constant 5.000000e-01 : f32
    %66 = vector.broadcast %cst_45 : f32 to vector<16x128xf32>
    %67 = arith.mulf %66, %65 : vector<16x128xf32>
    %68 = math.tanh %67 : vector<16x128xf32>
    %cst_46 = arith.constant 1.000000e+00 : f32
    %69 = vector.broadcast %cst_46 : f32 to vector<16x128xf32>
    %70 = arith.addf %68, %69 : vector<16x128xf32>
    %cst_47 = arith.constant 5.000000e-01 : f32
    %71 = vector.broadcast %cst_47 : f32 to vector<16x128xf32>
    %72 = arith.mulf %71, %70 : vector<16x128xf32>
    %c0_48 = arith.constant 0 : index
    %c0_49 = arith.constant 0 : index
    %73 = vector.load %arg16[%c0_48, %c0_49] : memref<16x128xf32, #tpu.memory_space<vmem>>, vector<16x128xf32>
    tpu.vector_store %arg16[%c0_48, %c0_49], %72 {strides = array<i32>} : memref<16x128xf32, #tpu.memory_space<vmem>>, vector<16x128xf32>,
    return
  }
  func.func @transform_0(%arg0: i32) -> (i32, i32) {
    %c0_i32 = arith.constant 0 : i32
    %c0_i32_0 = arith.constant 0 : i32
    return %arg0, %c0_i32 : i32, i32
  }
  func.func @transform_1(%arg0: i32) -> (i32, i32) {
    %c0_i32 = arith.constant 0 : i32
    %c0_i32_0 = arith.constant 0 : i32
    %c0_i32_1 = arith.constant 0 : i32
    return %c0_i32, %c0_i32_0 : i32, i32
  }
  func.func @transform_2(%arg0: i32) -> (i32, i32) {
    %c0_i32 = arith.constant 0 : i32
    %c0_i32_0 = arith.constant 0 : i32
    %c0_i32_1 = arith.constant 0 : i32
    return %c0_i32, %c0_i32_0 : i32, i32
  }
  func.func @transform_3(%arg0: i32) -> (i32, i32) {
    %c0_i32 = arith.constant 0 : i32
    %c0_i32_0 = arith.constant 0 : i32
    %c0_i32_1 = arith.constant 0 : i32
    return %c0_i32, %c0_i32_0 : i32, i32
  }
  func.func @transform_4(%arg0: i32) -> (i32, i32) {
    %c0_i32 = arith.constant 0 : i32
    %c0_i32_0 = arith.constant 0 : i32
    %c0_i32_1 = arith.constant 0 : i32
    return %c0_i32, %c0_i32_0 : i32, i32
  }
  func.func @transform_5(%arg0: i32) -> (i32, i32) {
    %c0_i32 = arith.constant 0 : i32
    %c0_i32_0 = arith.constant 0 : i32
    %c0_i32_1 = arith.constant 0 : i32
    return %c0_i32, %c0_i32_0 : i32, i32
  }
  func.func @transform_6(%arg0: i32) -> (i32, i32) {
    %c0_i32 = arith.constant 0 : i32
    %c0_i32_0 = arith.constant 0 : i32
    %c0_i32_1 = arith.constant 0 : i32
    return %c0_i32, %c0_i32_0 : i32, i32
  }
  func.func @transform_7(%arg0: i32) -> (i32, i32) {
    %c0_i32 = arith.constant 0 : i32
    %c0_i32_0 = arith.constant 0 : i32
    %c0_i32_1 = arith.constant 0 : i32
    return %c0_i32, %c0_i32_0 : i32, i32
  }
  func.func @transform_8(%arg0: i32) -> (i32, i32) {
    %c0_i32 = arith.constant 0 : i32
    %c0_i32_0 = arith.constant 0 : i32
    %c0_i32_1 = arith.constant 0 : i32
    return %c0_i32, %c0_i32_0 : i32, i32
  }
  func.func @transform_9(%arg0: i32) -> (i32, i32) {
    %c0_i32 = arith.constant 0 : i32
    %c0_i32_0 = arith.constant 0 : i32
    %c0_i32_1 = arith.constant 0 : i32
    return %c0_i32, %c0_i32_0 : i32, i32
  }
  func.func @transform_10(%arg0: i32) -> (i32, i32) {
    %c0_i32 = arith.constant 0 : i32
    %c0_i32_0 = arith.constant 0 : i32
    %c0_i32_1 = arith.constant 0 : i32
    return %c0_i32, %c0_i32_0 : i32, i32
  }
  func.func @transform_11(%arg0: i32) -> (i32, i32) {
    %c0_i32 = arith.constant 0 : i32
    %c0_i32_0 = arith.constant 0 : i32
    %c0_i32_1 = arith.constant 0 : i32
    return %c0_i32, %c0_i32_0 : i32, i32
  }
  func.func @transform_12(%arg0: i32) -> (i32, i32) {
    %c0_i32 = arith.constant 0 : i32
    %c0_i32_0 = arith.constant 0 : i32
    %c0_i32_1 = arith.constant 0 : i32
    return %c0_i32, %c0_i32_0 : i32, i32
  }
  func.func @transform_13(%arg0: i32) -> (i32, i32) {
    %c0_i32 = arith.constant 0 : i32
    %c0_i32_0 = arith.constant 0 : i32
    return %arg0, %c0_i32 : i32, i32
  }
  func.func @transform_14(%arg0: i32) -> (i32, i32) {
    %c0_i32 = arith.constant 0 : i32
    %c0_i32_0 = arith.constant 0 : i32
    return %arg0, %c0_i32 : i32, i32
  }
  func.func @transform_15(%arg0: i32) -> (i32, i32) {
    %c0_i32 = arith.constant 0 : i32
    %c0_i32_0 = arith.constant 0 : i32
    return %arg0, %c0_i32 : i32, i32
  }
}

module attributes {stable_mosaic.version = 11 : i64} {
  func.func @_dca_kernel(%arg0: i32, %arg1: memref<16x128xf32, #tpu.memory_space<vmem>>, %arg2: memref<128x128xf32, #tpu.memory_space<vmem>>, %arg3: memref<1x128xf32, #tpu.memory_space<vmem>>, %arg4: memref<128x128xf32, #tpu.memory_space<vmem>>, %arg5: memref<1x128xf32, #tpu.memory_space<vmem>>, %arg6: memref<128x128xf32, #tpu.memory_space<vmem>>, %arg7: memref<1x128xf32, #tpu.memory_space<vmem>>, %arg8: memref<128x128xf32, #tpu.memory_space<vmem>>, %arg9: memref<1x128xf32, #tpu.memory_space<vmem>>, %arg10: memref<128x128xf32, #tpu.memory_space<vmem>>, %arg11: memref<1x128xf32, #tpu.memory_space<vmem>>, %arg12: memref<128x384xf32, #tpu.memory_space<vmem>>, %arg13: memref<1x384xf32, #tpu.memory_space<vmem>>, %arg14: memref<16x128xf32, #tpu.memory_space<vmem>>, %arg15: memref<16x128xf32, #tpu.memory_space<vmem>>, %arg16: memref<16x128xf32, #tpu.memory_space<vmem>>) attributes {dimension_semantics = [#tpu.dimension_semantics<parallel>], iteration_bounds = array<i64: 1>, scalar_prefetch = 0 : i64, scratch_operands = 0 : i64, tpu.core_type = #tpu.core_type<tc>, window_params = [{transform_indices = @transform_0, window_bounds = array<i64: 16, 128>}, {pipeline_mode = #tpu.pipeline_mode<synchronous>, transform_indices = @transform_1, window_bounds = array<i64: 128, 128>}, {pipeline_mode = #tpu.pipeline_mode<synchronous>, transform_indices = @transform_2, window_bounds = array<i64: 1, 128>}, {pipeline_mode = #tpu.pipeline_mode<synchronous>, transform_indices = @transform_3, window_bounds = array<i64: 128, 128>}, {pipeline_mode = #tpu.pipeline_mode<synchronous>, transform_indices = @transform_4, window_bounds = array<i64: 1, 128>}, {pipeline_mode = #tpu.pipeline_mode<synchronous>, transform_indices = @transform_5, window_bounds = array<i64: 128, 128>}, {pipeline_mode = #tpu.pipeline_mode<synchronous>, transform_indices = @transform_6, window_bounds = array<i64: 1, 128>}, {pipeline_mode = #tpu.pipeline_mode<synchronous>, transform_indices = @transform_7, window_bounds = array<i64: 128, 128>}, {pipeline_mode = #tpu.pipeline_mode<synchronous>, transform_indices = @transform_8, window_bounds = array<i64: 1, 128>}, {pipeline_mode = #tpu.pipeline_mode<synchronous>, transform_indices = @transform_9, window_bounds = array<i64: 128, 128>}, {pipeline_mode = #tpu.pipeline_mode<synchronous>, transform_indices = @transform_10, window_bounds = array<i64: 1, 128>}, {pipeline_mode = #tpu.pipeline_mode<synchronous>, transform_indices = @transform_11, window_bounds = array<i64: 128, 384>}, {pipeline_mode = #tpu.pipeline_mode<synchronous>, transform_indices = @transform_12, window_bounds = array<i64: 1, 384>}, {transform_indices = @transform_13, window_bounds = array<i64: 16, 128>}, {transform_indices = @transform_14, window_bounds = array<i64: 16, 128>}, {transform_indices = @transform_15, window_bounds = array<i64: 16, 128>}]} {
    %c0 = arith.constant 0 : index
    %c0_0 = arith.constant 0 : index
    %0 = vector.load %arg1[%c0, %c0_0] : memref<16x128xf32, #tpu.memory_space<vmem>>, vector<16x128xf32>
    %c0_1 = arith.constant 0 : index
    %c0_2 = arith.constant 0 : index
    %1 = vector.load %arg2[%c0_1, %c0_2] : memref<128x128xf32, #tpu.memory_space<vmem>>, vector<128x128xf32>
    %c0_3 = arith.constant 0 : index
    %c0_4 = arith.constant 0 : index
    %2 = vector.load %arg3[%c0_3, %c0_4] : memref<1x128xf32, #tpu.memory_space<vmem>>, vector<1x128xf32>
    %cst = arith.constant dense<0.000000e+00> : vector<16x128xf32>
    %3 = tpu.matmul %0, %1, %cst {dimension_numbers = #tpu.dot_dimension_numbers<[1], [0], [0], [1], [0, 0, 1, 1], [], []>} : vector<16x128xf32>, vector<128x128xf32>, vector<16x128xf32> -> vector<16x128xf32>
    %4 = vector.broadcast %2 : vector<1x128xf32> to vector<16x128xf32>
    %5 = arith.addf %3, %4 : vector<16x128xf32>
    %cst_5 = arith.constant 0.000000e+00 : f32
    %6 = vector.broadcast %cst_5 : f32 to vector<16x128xf32>
    %7 = arith.maximumf %5, %6 : vector<16x128xf32>
    %c0_6 = arith.constant 0 : index
    %c0_7 = arith.constant 0 : index
    %8 = vector.load %arg4[%c0_6, %c0_7] : memref<128x128xf32, #tpu.memory_space<vmem>>, vector<128x128xf32>
    %c0_8 = arith.constant 0 : index
    %c0_9 = arith.constant 0 : index
    %9 = vector.load %arg5[%c0_8, %c0_9] : memref<1x128xf32, #tpu.memory_space<vmem>>, vector<1x128xf32>
    %cst_10 = arith.constant dense<0.000000e+00> : vector<16x128xf32>
    %10 = tpu.matmul %7, %8, %cst_10 {dimension_numbers = #tpu.dot_dimension_numbers<[1], [0], [0], [1], [0, 0, 1, 1], [], []>} : vector<16x128xf32>, vector<128x128xf32>, vector<16x128xf32> -> vector<16x128xf32>
    %11 = vector.broadcast %9 : vector<1x128xf32> to vector<16x128xf32>
    %12 = arith.addf %10, %11 : vector<16x128xf32>
    %cst_11 = arith.constant 0.000000e+00 : f32
    %13 = vector.broadcast %cst_11 : f32 to vector<16x128xf32>
    %14 = arith.maximumf %12, %13 : vector<16x128xf32>
    %c0_12 = arith.constant 0 : index
    %c0_13 = arith.constant 0 : index
    %15 = vector.load %arg6[%c0_12, %c0_13] : memref<128x128xf32, #tpu.memory_space<vmem>>, vector<128x128xf32>
    %c0_14 = arith.constant 0 : index
    %c0_15 = arith.constant 0 : index
    %16 = vector.load %arg7[%c0_14, %c0_15] : memref<1x128xf32, #tpu.memory_space<vmem>>, vector<1x128xf32>
    %cst_16 = arith.constant dense<0.000000e+00> : vector<16x128xf32>
    %17 = tpu.matmul %14, %15, %cst_16 {dimension_numbers = #tpu.dot_dimension_numbers<[1], [0], [0], [1], [0, 0, 1, 1], [], []>} : vector<16x128xf32>, vector<128x128xf32>, vector<16x128xf32> -> vector<16x128xf32>
    %18 = vector.broadcast %16 : vector<1x128xf32> to vector<16x128xf32>
    %19 = arith.addf %17, %18 : vector<16x128xf32>
    %cst_17 = arith.constant 0.000000e+00 : f32
    %20 = vector.broadcast %cst_17 : f32 to vector<16x128xf32>
    %21 = arith.maximumf %19, %20 : vector<16x128xf32>
    %c0_18 = arith.constant 0 : index
    %c0_19 = arith.constant 0 : index
    %22 = vector.load %arg8[%c0_18, %c0_19] : memref<128x128xf32, #tpu.memory_space<vmem>>, vector<128x128xf32>
    %c0_20 = arith.constant 0 : index
    %c0_21 = arith.constant 0 : index
    %23 = vector.load %arg9[%c0_20, %c0_21] : memref<1x128xf32, #tpu.memory_space<vmem>>, vector<1x128xf32>
    %cst_22 = arith.constant dense<0.000000e+00> : vector<16x128xf32>
    %24 = tpu.matmul %21, %22, %cst_22 {dimension_numbers = #tpu.dot_dimension_numbers<[1], [0], [0], [1], [0, 0, 1, 1], [], []>} : vector<16x128xf32>, vector<128x128xf32>, vector<16x128xf32> -> vector<16x128xf32>
    %25 = vector.broadcast %23 : vector<1x128xf32> to vector<16x128xf32>
    %26 = arith.addf %24, %25 : vector<16x128xf32>
    %cst_23 = arith.constant 0.000000e+00 : f32
    %27 = vector.broadcast %cst_23 : f32 to vector<16x128xf32>
    %28 = arith.maximumf %26, %27 : vector<16x128xf32>
    %c0_24 = arith.constant 0 : index
    %c0_25 = arith.constant 0 : index
    %29 = vector.load %arg10[%c0_24, %c0_25] : memref<128x128xf32, #tpu.memory_space<vmem>>, vector<128x128xf32>
    %c0_26 = arith.constant 0 : index
    %c0_27 = arith.constant 0 : index
    %30 = vector.load %arg11[%c0_26, %c0_27] : memref<1x128xf32, #tpu.memory_space<vmem>>, vector<1x128xf32>
    %cst_28 = arith.constant dense<0.000000e+00> : vector<16x128xf32>
    %31 = tpu.matmul %28, %29, %cst_28 {dimension_numbers = #tpu.dot_dimension_numbers<[1], [0], [0], [1], [0, 0, 1, 1], [], []>} : vector<16x128xf32>, vector<128x128xf32>, vector<16x128xf32> -> vector<16x128xf32>
    %32 = vector.broadcast %30 : vector<1x128xf32> to vector<16x128xf32>
    %33 = arith.addf %31, %32 : vector<16x128xf32>
    %cst_29 = arith.constant 0.000000e+00 : f32
    %34 = vector.broadcast %cst_29 : f32 to vector<16x128xf32>
    %35 = arith.maximumf %33, %34 : vector<16x128xf32>
    %c0_30 = arith.constant 0 : index
    %c0_31 = arith.constant 0 : index
    %36 = vector.load %arg12[%c0_30, %c0_31] : memref<128x384xf32, #tpu.memory_space<vmem>>, vector<128x384xf32>
    %c0_32 = arith.constant 0 : index
    %c0_33 = arith.constant 0 : index
    %37 = vector.load %arg13[%c0_32, %c0_33] : memref<1x384xf32, #tpu.memory_space<vmem>>, vector<1x384xf32>
    %cst_34 = arith.constant dense<0.000000e+00> : vector<16x384xf32>
    %38 = tpu.matmul %35, %36, %cst_34 {dimension_numbers = #tpu.dot_dimension_numbers<[1], [0], [0], [1], [0, 0, 1, 1], [], []>} : vector<16x128xf32>, vector<128x384xf32>, vector<16x384xf32> -> vector<16x384xf32>
    %39 = vector.broadcast %37 : vector<1x384xf32> to vector<16x384xf32>
    %40 = arith.addf %38, %39 : vector<16x384xf32>
    %41 = vector.extract_strided_slice %40 {offsets = [0, 0], sizes = [16, 128], strides = [1, 1]} : vector<16x384xf32> to vector<16x128xf32>
    %cst_35 = arith.constant 0.000000e+00 : f32
    %42 = vector.broadcast %cst_35 : f32 to vector<16x128xf32>
    %43 = arith.maximumf %41, %42 : vector<16x128xf32>
    %44 = math.absf %41 : vector<16x128xf32>
    %cst_36 = arith.constant 0.000000e+00 : f32
    %45 = vector.broadcast %cst_36 : f32 to vector<16x128xf32>
    %46 = arith.subf %45, %44 : vector<16x128xf32>
    %47 = math.exp %46 : vector<16x128xf32>
    %48 = math.log1p %47 : vector<16x128xf32>
    %49 = arith.addf %43, %48 : vector<16x128xf32>
    %cst_37 = arith.constant 9.99999997E-7 : f32
    %50 = vector.broadcast %cst_37 : f32 to vector<16x128xf32>
    %51 = arith.addf %49, %50 : vector<16x128xf32>
    %c0_38 = arith.constant 0 : index
    %c0_39 = arith.constant 0 : index
    %52 = vector.load %arg14[%c0_38, %c0_39] : memref<16x128xf32, #tpu.memory_space<vmem>>, vector<16x128xf32>
    tpu.vector_store %arg14[%c0_38, %c0_39], %51 {strides = array<i32>} : memref<16x128xf32, #tpu.memory_space<vmem>>, vector<16x128xf32>,
    %53 = vector.extract_strided_slice %40 {offsets = [0, 128], sizes = [16, 128], strides = [1, 1]} : vector<16x384xf32> to vector<16x128xf32>
    %cst_40 = arith.constant 0.000000e+00 : f32
    %54 = vector.broadcast %cst_40 : f32 to vector<16x128xf32>
    %55 = arith.maximumf %53, %54 : vector<16x128xf32>
    %56 = math.absf %53 : vector<16x128xf32>
    %cst_41 = arith.constant 0.000000e+00 : f32
    %57 = vector.broadcast %cst_41 : f32 to vector<16x128xf32>
    %58 = arith.subf %57, %56 : vector<16x128xf32>
    %59 = math.exp %58 : vector<16x128xf32>
    %60 = math.log1p %59 : vector<16x128xf32>
    %61 = arith.addf %55, %60 : vector<16x128xf32>
    %cst_42 = arith.constant 9.99999997E-7 : f32
    %62 = vector.broadcast %cst_42 : f32 to vector<16x128xf32>
    %63 = arith.addf %61, %62 : vector<16x128xf32>
    %c0_43 = arith.constant 0 : index
    %c0_44 = arith.constant 0 : index
    %64 = vector.load %arg15[%c0_43, %c0_44] : memref<16x128xf32, #tpu.memory_space<vmem>>, vector<16x128xf32>
    tpu.vector_store %arg15[%c0_43, %c0_44], %63 {strides = array<i32>} : memref<16x128xf32, #tpu.memory_space<vmem>>, vector<16x128xf32>,
    %65 = vector.extract_strided_slice %40 {offsets = [0, 256], sizes = [16, 128], strides = [1, 1]} : vector<16x384xf32> to vector<16x128xf32>
    %cst_45 = arith.constant 5.000000e-01 : f32
    %66 = vector.broadcast %cst_45 : f32 to vector<16x128xf32>
    %67 = arith.mulf %66, %65 : vector<16x128xf32>
    %68 = math.tanh %67 : vector<16x128xf32>
    %cst_46 = arith.constant 1.000000e+00 : f32
    %69 = vector.broadcast %cst_46 : f32 to vector<16x128xf32>
    %70 = arith.addf %68, %69 : vector<16x128xf32>
    %cst_47 = arith.constant 5.000000e-01 : f32
    %71 = vector.broadcast %cst_47 : f32 to vector<16x128xf32>
    %72 = arith.mulf %71, %70 : vector<16x128xf32>
    %c0_48 = arith.constant 0 : index
    %c0_49 = arith.constant 0 : index
    %73 = vector.load %arg16[%c0_48, %c0_49] : memref<16x128xf32, #tpu.memory_space<vmem>>, vector<16x128xf32>
    tpu.vector_store %arg16[%c0_48, %c0_49], %72 {strides = array<i32>} : memref<16x128xf32, #tpu.memory_space<vmem>>, vector<16x128xf32>,
    return
  }
  func.func @transform_0(%arg0: i32) -> (i32, i32) {
    %c0_i32 = arith.constant 0 : i32
    %c0_i32_0 = arith.constant 0 : i32
    return %arg0, %c0_i32 : i32, i32
  }
  func.func @transform_1(%arg0: i32) -> (i32, i32) {
    %c0_i32 = arith.constant 0 : i32
    %c0_i32_0 = arith.constant 0 : i32
    %c0_i32_1 = arith.constant 0 : i32
    return %c0_i32, %c0_i32_0 : i32, i32
  }
  func.func @transform_2(%arg0: i32) -> (i32, i32) {
    %c0_i32 = arith.constant 0 : i32
    %c0_i32_0 = arith.constant 0 : i32
    %c0_i32_1 = arith.constant 0 : i32
    return %c0_i32, %c0_i32_0 : i32, i32
  }
  func.func @transform_3(%arg0: i32) -> (i32, i32) {
    %c0_i32 = arith.constant 0 : i32
    %c0_i32_0 = arith.constant 0 : i32
    %c0_i32_1 = arith.constant 0 : i32
    return %c0_i32, %c0_i32_0 : i32, i32
  }
  func.func @transform_4(%arg0: i32) -> (i32, i32) {
    %c0_i32 = arith.constant 0 : i32
    %c0_i32_0 = arith.constant 0 : i32
    %c0_i32_1 = arith.constant 0 : i32
    return %c0_i32, %c0_i32_0 : i32, i32
  }
  func.func @transform_5(%arg0: i32) -> (i32, i32) {
    %c0_i32 = arith.constant 0 : i32
    %c0_i32_0 = arith.constant 0 : i32
    %c0_i32_1 = arith.constant 0 : i32
    return %c0_i32, %c0_i32_0 : i32, i32
  }
  func.func @transform_6(%arg0: i32) -> (i32, i32) {
    %c0_i32 = arith.constant 0 : i32
    %c0_i32_0 = arith.constant 0 : i32
    %c0_i32_1 = arith.constant 0 : i32
    return %c0_i32, %c0_i32_0 : i32, i32
  }
  func.func @transform_7(%arg0: i32) -> (i32, i32) {
    %c0_i32 = arith.constant 0 : i32
    %c0_i32_0 = arith.constant 0 : i32
    %c0_i32_1 = arith.constant 0 : i32
    return %c0_i32, %c0_i32_0 : i32, i32
  }
  func.func @transform_8(%arg0: i32) -> (i32, i32) {
    %c0_i32 = arith.constant 0 : i32
    %c0_i32_0 = arith.constant 0 : i32
    %c0_i32_1 = arith.constant 0 : i32
    return %c0_i32, %c0_i32_0 : i32, i32
  }
  func.func @transform_9(%arg0: i32) -> (i32, i32) {
    %c0_i32 = arith.constant 0 : i32
    %c0_i32_0 = arith.constant 0 : i32
    %c0_i32_1 = arith.constant 0 : i32
    return %c0_i32, %c0_i32_0 : i32, i32
  }
  func.func @transform_10(%arg0: i32) -> (i32, i32) {
    %c0_i32 = arith.constant 0 : i32
    %c0_i32_0 = arith.constant 0 : i32
    %c0_i32_1 = arith.constant 0 : i32
    return %c0_i32, %c0_i32_0 : i32, i32
  }
  func.func @transform_11(%arg0: i32) -> (i32, i32) {
    %c0_i32 = arith.constant 0 : i32
    %c0_i32_0 = arith.constant 0 : i32
    %c0_i32_1 = arith.constant 0 : i32
    return %c0_i32, %c0_i32_0 : i32, i32
  }
  func.func @transform_12(%arg0: i32) -> (i32, i32) {
    %c0_i32 = arith.constant 0 : i32
    %c0_i32_0 = arith.constant 0 : i32
    %c0_i32_1 = arith.constant 0 : i32
    return %c0_i32, %c0_i32_0 : i32, i32
  }
  func.func @transform_13(%arg0: i32) -> (i32, i32) {
    %c0_i32 = arith.constant 0 : i32
    %c0_i32_0 = arith.constant 0 : i32
    return %arg0, %c0_i32 : i32, i32
  }
  func.func @transform_14(%arg0: i32) -> (i32, i32) {
    %c0_i32 = arith.constant 0 : i32
    %c0_i32_0 = arith.constant 0 : i32
    return %arg0, %c0_i32 : i32, i32
  }
  func.func @transform_15(%arg0: i32) -> (i32, i32) {
    %c0_i32 = arith.constant 0 : i32
    %c0_i32_0 = arith.constant 0 : i32
    return %arg0, %c0_i32 : i32, i32
  }
}

</mosaic_0001>

<llo_original>
// kernel: tpu_custom_call.1
$region0: #{tpu_custom_call.1}
  #allocation0 [shape = 'u32[]', space=smem, size = 0x4, offset = 0x4, fixed_abs, tag = 'smem constant byte address 0x4 - core index']
  #allocation1 [shape = 'u32[144,128]{1,0:T(1,128)}', space=vmem, size = 0x12000, scoped, tag = 'internal scratch']
  %s0 = inlined_call_operand.hbm [shape: f32[16,128], index: 0, kind: input, shape index: {}]
  %s1 = inlined_call_operand.hbm [shape: f32[128,128], index: 1, kind: input, shape index: {}]
  %s2 = inlined_call_operand.vmem [shape: f32[1,128], index: 2, kind: input, shape index: {}]
  %s3 = inlined_call_operand.hbm [shape: f32[128,128], index: 3, kind: input, shape index: {}]
  %s4 = inlined_call_operand.vmem [shape: f32[1,128], index: 4, kind: input, shape index: {}]
  %s5 = inlined_call_operand.hbm [shape: f32[128,128], index: 5, kind: input, shape index: {}]
  %s6 = inlined_call_operand.vmem [shape: f32[1,128], index: 6, kind: input, shape index: {}]
  %s7 = inlined_call_operand.hbm [shape: f32[128,128], index: 7, kind: input, shape index: {}]
  %s8 = inlined_call_operand.vmem [shape: f32[1,128], index: 8, kind: input, shape index: {}]
  %s9 = inlined_call_operand.hbm [shape: f32[128,128], index: 9, kind: input, shape index: {}]
  %s10 = inlined_call_operand.vmem [shape: f32[1,128], index: 10, kind: input, shape index: {}]
  %s11 = inlined_call_operand.hbm [shape: f32[128,384], index: 11, kind: input, shape index: {}]
  %s12 = inlined_call_operand.vmem [shape: f32[1,384], index: 12, kind: input, shape index: {}]
  %s13 = inlined_call_operand.hbm [shape: f32[16,128], index: 13, kind: output, shape index: {0}]
  %s14 = inlined_call_operand.hbm [shape: f32[16,128], index: 14, kind: output, shape index: {1}]
  %s15 = inlined_call_operand.hbm [shape: f32[16,128], index: 15, kind: output, shape index: {2}]
  %16 = xla_tuple %s13, %s14, %s15
  %s17 = sld [smem:[#allocation0]]
  $region106: #{tpu_custom_call.1} parent=0
    _
  %s19 = ssub.s32 1, %s17
  %s20 = scalar_select 0, %s19, %s17
  $region1: #{tpu_custom_call.1} parent=0
    #allocation2 [shape = 'u8[8192]{0}', space=vmem, size = 0x2000, scoped, tag = 'input window, operand 0, single buffered']
    #allocation3 [shape = 's32[1]{0}', space=sflag, size = 0x4, scoped, tag = 'scoped memory for tpu_custom_call.1']
    #allocation4 [shape = 's32[1]{0}', space=sflag, size = 0x4, scoped, tag = 'scoped memory for tpu_custom_call.1']
    #allocation5 [shape = 'u8[65536]{0}', space=vmem, size = 0x10000, scoped, tag = 'input window, operand 1, single buffered']
    #allocation6 [shape = 's32[1]{0}', space=sflag, size = 0x4, scoped, tag = 'scoped memory for tpu_custom_call.1']
    #allocation7 [shape = 'u8[65536]{0}', space=vmem, size = 0x10000, scoped, tag = 'input window, operand 3, single buffered']
    #allocation8 [shape = 'u8[65536]{0}', space=vmem, size = 0x10000, scoped, tag = 'input window, operand 5, single buffered']
    #allocation9 [shape = 's32[1]{0}', space=sflag, size = 0x4, scoped, tag = 'scoped memory for tpu_custom_call.1']
    #allocation10 [shape = 'u8[65536]{0}', space=vmem, size = 0x10000, scoped, tag = 'input window, operand 7, single buffered']
    #allocation11 [shape = 'u8[65536]{0}', space=vmem, size = 0x10000, scoped, tag = 'input window, operand 9, single buffered']
    #allocation12 [shape = 's32[1]{0}', space=sflag, size = 0x4, scoped, tag = 'scoped memory for tpu_custom_call.1']
    #allocation13 [shape = 'u8[196608]{0}', space=vmem, size = 0x30000, scoped, tag = 'input window, operand 11, single buffered']
    #allocation14 [shape = 'u8[8192]{0}', space=vmem, size = 0x2000, scoped, tag = 'output window, operand 0, single buffered']
    #allocation15 [shape = 'u8[8192]{0}', space=vmem, size = 0x2000, scoped, tag = 'output window, operand 1, single buffered']
    #allocation16 [shape = 's32[1]{0}', space=sflag, size = 0x4, scoped, tag = 'scoped memory for tpu_custom_call.1']
    #allocation17 [shape = 'u8[8192]{0}', space=vmem, size = 0x2000, scoped, tag = 'output window, operand 2, single buffered']
    %21 = vsyncpa [#allocation3], 0
    %22 = vsyncpa [#allocation6], 0
    %23 = vsyncpa [#allocation9], 0
    %24 = vsyncpa [#allocation12], 0
    %25 = vsyncpa [#allocation4], 0
    %26 = vsyncpa [#allocation16], 0
    // Predicated region
    $region2: #{tpu_custom_call.1} parent=1 // pred_check
      _
    $region3: #{tpu_custom_call.1} parent=1 // pred_check_branch
      %28 = sbr.rel (0) target = $region5
    $region4: #{tpu_custom_call.1} parent=1 // pred_region
      %s30 = ssub.s32 256, 256
      %31 = vsyncadd [#allocation3], %s30
      %s32 = sshll.u32 [#allocation2], 4
      %s33 = int_to_ptr.vmem [resolvable:$true] %s32
      %38 = dma.hbm_to_vmem [thread:$0]  %s0, 256, %s33, [#allocation3], 128, 128, 8
    $region5: #{tpu_custom_call.1} parent=1 // pred_fallthru
      _
    // Predicated region
    $region6: #{tpu_custom_call.1} parent=1 // pred_check
      _
    $region7: #{tpu_custom_call.1} parent=1 // pred_check_branch
      %40 = sbr.rel (0) target = $region9
    $region8: #{tpu_custom_call.1} parent=1 // pred_region
      %s42 = ssub.s32 2048, 2048
      %43 = vsyncadd [#allocation6], %s42
      %s44 = sshll.u32 [#allocation5], 4
      %s45 = int_to_ptr.vmem [resolvable:$true] %s44
      %50 = dma.hbm_to_vmem [thread:$0]  %s1, 2048, %s45, [#allocation6], 128, 128, 8
    $region9: #{tpu_custom_call.1} parent=1 // pred_fallthru
      _
    // Predicated region
    $region10: #{tpu_custom_call.1} parent=1 // pred_check
      _
    $region11: #{tpu_custom_call.1} parent=1 // pred_check_branch
      %52 = sbr.rel (0) target = $region13
    $region12: #{tpu_custom_call.1} parent=1 // pred_region
      _
    $region13: #{tpu_custom_call.1} parent=1 // pred_fallthru
      _
    // Predicated region
    $region14: #{tpu_custom_call.1} parent=1 // pred_check
      _
    $region15: #{tpu_custom_call.1} parent=1 // pred_check_branch
      %54 = sbr.rel (0) target = $region17
    $region16: #{tpu_custom_call.1} parent=1 // pred_region
      %s56 = ssub.s32 2048, 2048
      %57 = vsyncadd [#allocation6], %s56
      %s58 = sshll.u32 [#allocation7], 4
      %s59 = int_to_ptr.vmem [resolvable:$true] %s58
      %64 = dma.hbm_to_vmem [thread:$0]  %s3, 2048, %s59, [#allocation6], 128, 128, 8
    $region17: #{tpu_custom_call.1} parent=1 // pred_fallthru
      _
    // Predicated region
    $region18: #{tpu_custom_call.1} parent=1 // pred_check
      _
    $region19: #{tpu_custom_call.1} parent=1 // pred_check_branch
      %66 = sbr.rel (0) target = $region21
    $region20: #{tpu_custom_call.1} parent=1 // pred_region
      _
    $region21: #{tpu_custom_call.1} parent=1 // pred_fallthru
      _
    // Predicated region
    $region22: #{tpu_custom_call.1} parent=1 // pred_check
      _
    $region23: #{tpu_custom_call.1} parent=1 // pred_check_branch
      %68 = sbr.rel (0) target = $region25
    $region24: #{tpu_custom_call.1} parent=1 // pred_region
      %s70 = ssub.s32 2048, 2048
      %71 = vsyncadd [#allocation9], %s70
      %s72 = sshll.u32 [#allocation8], 4
      %s73 = int_to_ptr.vmem [resolvable:$true] %s72
      %78 = dma.hbm_to_vmem [thread:$0]  %s5, 2048, %s73, [#allocation9], 128, 128, 8
    $region25: #{tpu_custom_call.1} parent=1 // pred_fallthru
      _
    // Predicated region
    $region26: #{tpu_custom_call.1} parent=1 // pred_check
      _
    $region27: #{tpu_custom_call.1} parent=1 // pred_check_branch
      %80 = sbr.rel (0) target = $region29
    $region28: #{tpu_custom_call.1} parent=1 // pred_region
      _
    $region29: #{tpu_custom_call.1} parent=1 // pred_fallthru
      _
    // Predicated region
    $region30: #{tpu_custom_call.1} parent=1 // pred_check
      _
    $region31: #{tpu_custom_call.1} parent=1 // pred_check_branch
      %82 = sbr.rel (0) target = $region33
    $region32: #{tpu_custom_call.1} parent=1 // pred_region
      %s84 = ssub.s32 2048, 2048
      %85 = vsyncadd [#allocation9], %s84
      %s86 = sshll.u32 [#allocation10], 4
      %s87 = int_to_ptr.vmem [resolvable:$true] %s86
      %92 = dma.hbm_to_vmem [thread:$0]  %s7, 2048, %s87, [#allocation9], 128, 128, 8
    $region33: #{tpu_custom_call.1} parent=1 // pred_fallthru
      _
    // Predicated region
    $region34: #{tpu_custom_call.1} parent=1 // pred_check
      _
    $region35: #{tpu_custom_call.1} parent=1 // pred_check_branch
      %94 = sbr.rel (0) target = $region37
    $region36: #{tpu_custom_call.1} parent=1 // pred_region
      _
    $region37: #{tpu_custom_call.1} parent=1 // pred_fallthru
      _
    // Predicated region
    $region38: #{tpu_custom_call.1} parent=1 // pred_check
      _
    $region39: #{tpu_custom_call.1} parent=1 // pred_check_branch
      %96 = sbr.rel (0) target = $region41
    $region40: #{tpu_custom_call.1} parent=1 // pred_region
      %s98 = ssub.s32 2048, 2048
      %99 = vsyncadd [#allocation12], %s98
      %s100 = sshll.u32 [#allocation11], 4
      %s101 = int_to_ptr.vmem [resolvable:$true] %s100
      %106 = dma.hbm_to_vmem [thread:$0]  %s9, 2048, %s101, [#allocation12], 128, 128, 8
    $region41: #{tpu_custom_call.1} parent=1 // pred_fallthru
      _
    // Predicated region
    $region42: #{tpu_custom_call.1} parent=1 // pred_check
      _
    $region43: #{tpu_custom_call.1} parent=1 // pred_check_branch
      %108 = sbr.rel (0) target = $region45
    $region44: #{tpu_custom_call.1} parent=1 // pred_region
      _
    $region45: #{tpu_custom_call.1} parent=1 // pred_fallthru
      _
    // Predicated region
    $region46: #{tpu_custom_call.1} parent=1 // pred_check
      _
    $region47: #{tpu_custom_call.1} parent=1 // pred_check_branch
      %110 = sbr.rel (0) target = $region49
    $region48: #{tpu_custom_call.1} parent=1 // pred_region
      %s112 = ssub.s32 6144, 6144
      %113 = vsyncadd [#allocation12], %s112
      %s114 = sshll.u32 [#allocation13], 4
      %s115 = int_to_ptr.vmem [resolvable:$true] %s114
      %120 = dma.hbm_to_vmem [thread:$0]  %s11, 6144, %s115, [#allocation12], 384, 384, 24
    $region49: #{tpu_custom_call.1} parent=1 // pred_fallthru
      _
    // Predicated region
    $region50: #{tpu_custom_call.1} parent=1 // pred_check
      _
    $region51: #{tpu_custom_call.1} parent=1 // pred_check_branch
      %122 = sbr.rel (0) target = $region53
    $region52: #{tpu_custom_call.1} parent=1 // pred_region
      _
    $region53: #{tpu_custom_call.1} parent=1 // pred_fallthru
      _
    // Predicated region
    $region54: #{tpu_custom_call.1} parent=1 // pred_check
      _
    $region55: #{tpu_custom_call.1} parent=1 // pred_check_branch
      %124 = sbr.rel (0) target = $region57
    $region56: #{tpu_custom_call.1} parent=1 // pred_region
      %125 = dma.done [#allocation3], 256
    $region57: #{tpu_custom_call.1} parent=1 // pred_fallthru
      _
    // Predicated region
    $region58: #{tpu_custom_call.1} parent=1 // pred_check
      _
    $region59: #{tpu_custom_call.1} parent=1 // pred_check_branch
      %127 = sbr.rel (0) target = $region61
    $region60: #{tpu_custom_call.1} parent=1 // pred_region
      %128 = dma.done [#allocation6], 2048
    $region61: #{tpu_custom_call.1} parent=1 // pred_fallthru
      _
    // Predicated region
    $region62: #{tpu_custom_call.1} parent=1 // pred_check
      _
    $region63: #{tpu_custom_call.1} parent=1 // pred_check_branch
      %130 = sbr.rel (0) target = $region65
    $region64: #{tpu_custom_call.1} parent=1 // pred_region
      %131 = dma.done [#allocation6], 2048
    $region65: #{tpu_custom_call.1} parent=1 // pred_fallthru
      _
    // Predicated region
    $region66: #{tpu_custom_call.1} parent=1 // pred_check
      _
    $region67: #{tpu_custom_call.1} parent=1 // pred_check_branch
      %133 = sbr.rel (0) target = $region69
    $region68: #{tpu_custom_call.1} parent=1 // pred_region
      %134 = dma.done [#allocation9], 2048
    $region69: #{tpu_custom_call.1} parent=1 // pred_fallthru
      _
    // Predicated region
    $region70: #{tpu_custom_call.1} parent=1 // pred_check
      _
    $region71: #{tpu_custom_call.1} parent=1 // pred_check_branch
      %136 = sbr.rel (0) target = $region73
    $region72: #{tpu_custom_call.1} parent=1 // pred_region
      %137 = dma.done [#allocation9], 2048
    $region73: #{tpu_custom_call.1} parent=1 // pred_fallthru
      _
    // Predicated region
    $region74: #{tpu_custom_call.1} parent=1 // pred_check
      _
    $region75: #{tpu_custom_call.1} parent=1 // pred_check_branch
      %139 = sbr.rel (0) target = $region77
    $region76: #{tpu_custom_call.1} parent=1 // pred_region
      %140 = dma.done [#allocation12], 2048
    $region77: #{tpu_custom_call.1} parent=1 // pred_fallthru
      _
    // Predicated region
    $region78: #{tpu_custom_call.1} parent=1 // pred_check
      _
    $region79: #{tpu_custom_call.1} parent=1 // pred_check_branch
      %142 = sbr.rel (0) target = $region81
    $region80: #{tpu_custom_call.1} parent=1 // pred_region
      %143 = dma.done [#allocation12], 6144
    $region81: #{tpu_custom_call.1} parent=1 // pred_fallthru
      _
    %v144 = vld [vmem:[#allocation2] sm:$0xff]
    %v145 = vld [vmem:[#allocation2 + $0x8] sm:$0xff]
    %v146 = vld [vmem:[#allocation5] sm:$0xff]
    %v147 = vld [vmem:[#allocation5 + $0x8] sm:$0xff]
    %v148 = vld [vmem:[#allocation5 + $0x10] sm:$0xff]
    %v149 = vld [vmem:[#allocation5 + $0x18] sm:$0xff]
    %v150 = vld [vmem:[#allocation5 + $0x20] sm:$0xff]
    %v151 = vld [vmem:[#allocation5 + $0x28] sm:$0xff]
    %v152 = vld [vmem:[#allocation5 + $0x30] sm:$0xff]
    %v153 = vld [vmem:[#allocation5 + $0x38] sm:$0xff]
    %v154 = vld [vmem:[#allocation5 + $0x40] sm:$0xff]
    %v155 = vld [vmem:[#allocation5 + $0x48] sm:$0xff]
    %v156 = vld [vmem:[#allocation5 + $0x50] sm:$0xff]
    %v157 = vld [vmem:[#allocation5 + $0x58] sm:$0xff]
    %v158 = vld [vmem:[#allocation5 + $0x60] sm:$0xff]
    %v159 = vld [vmem:[#allocation5 + $0x68] sm:$0xff]
    %v160 = vld [vmem:[#allocation5 + $0x70] sm:$0xff]
    %v161 = vld [vmem:[#allocation5 + $0x78] sm:$0xff]
    %v162 = vld [vmem:[%s2] sm:$0x1]
    %v164 = vlaneseq
    %v165 = vshrl.u32 %v164, 7
    %v166 = vsub.s32 0, %v165
    %v167 = vrot.slane %v162, %v166
    %169 = vmatprep.subr.mxu0 0.0
    %170 = vmatpush1.msra.mxu0 %v146
    %171 = vmatprep.subr.mxu0 0.0
    %172 = vmatpush1.msra.mxu0 %v147
    %173 = vmatprep.subr.mxu0 0.0
    %174 = vmatpush1.msra.mxu0 %v148
    %175 = vmatprep.subr.mxu0 0.0
    %176 = vmatpush1.msra.mxu0 %v149
    %177 = vmatprep.subr.mxu0 0.0
    %178 = vmatpush1.msra.mxu0 %v150
    %179 = vmatprep.subr.mxu0 0.0
    %180 = vmatpush1.msra.mxu0 %v151
    %181 = vmatprep.subr.mxu0 0.0
    %182 = vmatpush1.msra.mxu0 %v152
    %183 = vmatprep.subr.mxu0 0.0
    %184 = vmatpush1.msra.mxu0 %v153
    %185 = vmatprep.subr.mxu0 0.0
    %186 = vmatpush1.msra.mxu0 %v154
    %187 = vmatprep.subr.mxu0 0.0
    %188 = vmatpush1.msra.mxu0 %v155
    %189 = vmatprep.subr.mxu0 0.0
    %190 = vmatpush1.msra.mxu0 %v156
    %191 = vmatprep.subr.mxu0 0.0
    %192 = vmatpush1.msra.mxu0 %v157
    %193 = vmatprep.subr.mxu0 0.0
    %194 = vmatpush1.msra.mxu0 %v158
    %195 = vmatprep.subr.mxu0 0.0
    %196 = vmatpush1.msra.mxu0 %v159
    %197 = vmatprep.subr.mxu0 0.0
    %198 = vmatpush1.msra.mxu0 %v160
    %199 = vmatprep.subr.mxu0 0.0
    %200 = vmatpush1.msra.mxu0 %v161
    %201 = vmatprep.subr.mxu0 0.0
    %202 = vmatpush1.msra.mxu0 0.0
    %203 = vmatprep.subr.mxu0 0.0
    %204 = vmatpush1.msra.mxu0 0.0
    %205 = vmatprep.subr.mxu0 0.0
    %206 = vmatpush1.msra.mxu0 0.0
    %207 = vmatprep.subr.mxu0 0.0
    %208 = vmatpush1.msra.mxu0 0.0
    %209 = vmatprep.subr.mxu0 0.0
    %210 = vmatpush1.msra.mxu0 0.0
    %211 = vmatprep.subr.mxu0 0.0
    %212 = vmatpush1.msra.mxu0 0.0
    %213 = vmatprep.subr.mxu0 0.0
    %214 = vmatpush1.msra.mxu0 0.0
    %215 = vmatprep.subr.mxu0 0.0
    %216 = vmatpush1.msra.mxu0 0.0
    %217 = vmatprep.subr.mxu0 0.0
    %218 = vmatpush1.msra.mxu0 0.0
    %219 = vmatprep.subr.mxu0 0.0
    %220 = vmatpush1.msra.mxu0 0.0
    %221 = vmatprep.subr.mxu0 0.0
    %222 = vmatpush1.msra.mxu0 0.0
    %223 = vmatprep.subr.mxu0 0.0
    %224 = vmatpush1.msra.mxu0 0.0
    %225 = vmatprep.subr.mxu0 0.0
    %226 = vmatpush1.msra.mxu0 0.0
    %227 = vmatprep.subr.mxu0 0.0
    %228 = vmatpush1.msra.mxu0 0.0
    %229 = vmatprep.subr.mxu0 0.0
    %230 = vmatpush1.msra.mxu0 0.0
    %231 = vmatprep.subr.mxu0 0.0
    %232 = vmatpush1.msra.mxu0 0.0
    %233 = vmatprep.mubr.f32.mxu0 0.0
    %234 = vmatmul.mubr.f32.gmra.mrb[0].mxu0 %v144
    %v235 = vpop.f32.mrb[0].mxu0
    %v236 = vadd.f32 %v167, %v235
    %v237 = vpop.f32.mrb[0].mxu0
    %238 = vmatprep.mubr.f32.mxu0 0.0
    %239 = vmatmul.mubr.f32.gmra.mrb[0].mxu0 %v145
    %v240 = vpop.f32.mrb[0].mxu0
    %v241 = vadd.f32 %v167, %v240
    %v242 = vpop.f32.mrb[0].mxu0
    %243 = vdwg.mxu0
    %v244 = vmax.f32 %v236, 0.0
    %v245 = vmax.f32 %v241, 0.0
    %v246 = vld [vmem:[#allocation7] sm:$0xff]
    %v247 = vld [vmem:[#allocation7 + $0x8] sm:$0xff]
    %v248 = vld [vmem:[#allocation7 + $0x10] sm:$0xff]
    %v249 = vld [vmem:[#allocation7 + $0x18] sm:$0xff]
    %v250 = vld [vmem:[#allocation7 + $0x20] sm:$0xff]
    %v251 = vld [vmem:[#allocation7 + $0x28] sm:$0xff]
    %v252 = vld [vmem:[#allocation7 + $0x30] sm:$0xff]
    %v253 = vld [vmem:[#allocation7 + $0x38] sm:$0xff]
    %v254 = vld [vmem:[#allocation7 + $0x40] sm:$0xff]
    %v255 = vld [vmem:[#allocation7 + $0x48] sm:$0xff]
    %v256 = vld [vmem:[#allocation7 + $0x50] sm:$0xff]
    %v257 = vld [vmem:[#allocation7 + $0x58] sm:$0xff]
    %v258 = vld [vmem:[#allocation7 + $0x60] sm:$0xff]
    %v259 = vld [vmem:[#allocation7 + $0x68] sm:$0xff]
    %v260 = vld [vmem:[#allocation7 + $0x70] sm:$0xff]
    %v261 = vld [vmem:[#allocation7 + $0x78] sm:$0xff]
    %v262 = vld [vmem:[%s4] sm:$0x1]
    %v264 = vlaneseq
    %v265 = vshrl.u32 %v264, 7
    %v266 = vsub.s32 0, %v265
    %v267 = vrot.slane %v262, %v266
    %269 = vmatprep.subr.mxu0 0.0
    %270 = vmatpush1.msra.mxu0 %v246
    %271 = vmatprep.subr.mxu0 0.0
    %272 = vmatpush1.msra.mxu0 %v247
    %273 = vmatprep.subr.mxu0 0.0
    %274 = vmatpush1.msra.mxu0 %v248
    %275 = vmatprep.subr.mxu0 0.0
    %276 = vmatpush1.msra.mxu0 %v249
    %277 = vmatprep.subr.mxu0 0.0
    %278 = vmatpush1.msra.mxu0 %v250
    %279 = vmatprep.subr.mxu0 0.0
    %280 = vmatpush1.msra.mxu0 %v251
    %281 = vmatprep.subr.mxu0 0.0
    %282 = vmatpush1.msra.mxu0 %v252
    %283 = vmatprep.subr.mxu0 0.0
    %284 = vmatpush1.msra.mxu0 %v253
    %285 = vmatprep.subr.mxu0 0.0
    %286 = vmatpush1.msra.mxu0 %v254
    %287 = vmatprep.subr.mxu0 0.0
    %288 = vmatpush1.msra.mxu0 %v255
    %289 = vmatprep.subr.mxu0 0.0
    %290 = vmatpush1.msra.mxu0 %v256
    %291 = vmatprep.subr.mxu0 0.0
    %292 = vmatpush1.msra.mxu0 %v257
    %293 = vmatprep.subr.mxu0 0.0
    %294 = vmatpush1.msra.mxu0 %v258
    %295 = vmatprep.subr.mxu0 0.0
    %296 = vmatpush1.msra.mxu0 %v259
    %297 = vmatprep.subr.mxu0 0.0
    %298 = vmatpush1.msra.mxu0 %v260
    %299 = vmatprep.subr.mxu0 0.0
    %300 = vmatpush1.msra.mxu0 %v261
    %301 = vmatprep.subr.mxu0 0.0
    %302 = vmatpush1.msra.mxu0 0.0
    %303 = vmatprep.subr.mxu0 0.0
    %304 = vmatpush1.msra.mxu0 0.0
    %305 = vmatprep.subr.mxu0 0.0
    %306 = vmatpush1.msra.mxu0 0.0
    %307 = vmatprep.subr.mxu0 0.0
    %308 = vmatpush1.msra.mxu0 0.0
    %309 = vmatprep.subr.mxu0 0.0
    %310 = vmatpush1.msra.mxu0 0.0
    %311 = vmatprep.subr.mxu0 0.0
    %312 = vmatpush1.msra.mxu0 0.0
    %313 = vmatprep.subr.mxu0 0.0
    %314 = vmatpush1.msra.mxu0 0.0
    %315 = vmatprep.subr.mxu0 0.0
    %316 = vmatpush1.msra.mxu0 0.0
    %317 = vmatprep.subr.mxu0 0.0
    %318 = vmatpush1.msra.mxu0 0.0
    %319 = vmatprep.subr.mxu0 0.0
    %320 = vmatpush1.msra.mxu0 0.0
    %321 = vmatprep.subr.mxu0 0.0
    %322 = vmatpush1.msra.mxu0 0.0
    %323 = vmatprep.subr.mxu0 0.0
    %324 = vmatpush1.msra.mxu0 0.0
    %325 = vmatprep.subr.mxu0 0.0
    %326 = vmatpush1.msra.mxu0 0.0
    %327 = vmatprep.subr.mxu0 0.0
    %328 = vmatpush1.msra.mxu0 0.0
    %329 = vmatprep.subr.mxu0 0.0
    %330 = vmatpush1.msra.mxu0 0.0
    %331 = vmatprep.subr.mxu0 0.0
    %332 = vmatpush1.msra.mxu0 0.0
    %333 = vmatprep.mubr.f32.mxu0 0.0
    %334 = vmatmul.mubr.f32.gmra.mrb[0].mxu0 %v244
    %v335 = vpop.f32.mrb[0].mxu0
    %v336 = vadd.f32 %v267, %v335
    %v337 = vpop.f32.mrb[0].mxu0
    %338 = vmatprep.mubr.f32.mxu0 0.0
    %339 = vmatmul.mubr.f32.gmra.mrb[0].mxu0 %v245
    %v340 = vpop.f32.mrb[0].mxu0
    %v341 = vadd.f32 %v267, %v340
    %v342 = vpop.f32.mrb[0].mxu0
    %343 = vdwg.mxu0
    %v344 = vmax.f32 %v336, 0.0
    %v345 = vmax.f32 %v341, 0.0
    %v346 = vld [vmem:[#allocation8] sm:$0xff]
    %v347 = vld [vmem:[#allocation8 + $0x8] sm:$0xff]
    %v348 = vld [vmem:[#allocation8 + $0x10] sm:$0xff]
    %v349 = vld [vmem:[#allocation8 + $0x18] sm:$0xff]
    %v350 = vld [vmem:[#allocation8 + $0x20] sm:$0xff]
    %v351 = vld [vmem:[#allocation8 + $0x28] sm:$0xff]
    %v352 = vld [vmem:[#allocation8 + $0x30] sm:$0xff]
    %v353 = vld [vmem:[#allocation8 + $0x38] sm:$0xff]
    %v354 = vld [vmem:[#allocation8 + $0x40] sm:$0xff]
    %v355 = vld [vmem:[#allocation8 + $0x48] sm:$0xff]
    %v356 = vld [vmem:[#allocation8 + $0x50] sm:$0xff]
    %v357 = vld [vmem:[#allocation8 + $0x58] sm:$0xff]
    %v358 = vld [vmem:[#allocation8 + $0x60] sm:$0xff]
    %v359 = vld [vmem:[#allocation8 + $0x68] sm:$0xff]
    %v360 = vld [vmem:[#allocation8 + $0x70] sm:$0xff]
    %v361 = vld [vmem:[#allocation8 + $0x78] sm:$0xff]
    %v362 = vld [vmem:[%s6] sm:$0x1]
    %v364 = vlaneseq
    %v365 = vshrl.u32 %v364, 7
    %v366 = vsub.s32 0, %v365
    %v367 = vrot.slane %v362, %v366
    %369 = vmatprep.subr.mxu0 0.0
    %370 = vmatpush1.msra.mxu0 %v346
    %371 = vmatprep.subr.mxu0 0.0
    %372 = vmatpush1.msra.mxu0 %v347
    %373 = vmatprep.subr.mxu0 0.0
    %374 = vmatpush1.msra.mxu0 %v348
    %375 = vmatprep.subr.mxu0 0.0
    %376 = vmatpush1.msra.mxu0 %v349
    %377 = vmatprep.subr.mxu0 0.0
    %378 = vmatpush1.msra.mxu0 %v350
    %379 = vmatprep.subr.mxu0 0.0
    %380 = vmatpush1.msra.mxu0 %v351
    %381 = vmatprep.subr.mxu0 0.0
    %382 = vmatpush1.msra.mxu0 %v352
    %383 = vmatprep.subr.mxu0 0.0
    %384 = vmatpush1.msra.mxu0 %v353
    %385 = vmatprep.subr.mxu0 0.0
    %386 = vmatpush1.msra.mxu0 %v354
    %387 = vmatprep.subr.mxu0 0.0
    %388 = vmatpush1.msra.mxu0 %v355
    %389 = vmatprep.subr.mxu0 0.0
    %390 = vmatpush1.msra.mxu0 %v356
    %391 = vmatprep.subr.mxu0 0.0
    %392 = vmatpush1.msra.mxu0 %v357
    %393 = vmatprep.subr.mxu0 0.0
    %394 = vmatpush1.msra.mxu0 %v358
    %395 = vmatprep.subr.mxu0 0.0
    %396 = vmatpush1.msra.mxu0 %v359
    %397 = vmatprep.subr.mxu0 0.0
    %398 = vmatpush1.msra.mxu0 %v360
    %399 = vmatprep.subr.mxu0 0.0
    %400 = vmatpush1.msra.mxu0 %v361
    %401 = vmatprep.subr.mxu0 0.0
    %402 = vmatpush1.msra.mxu0 0.0
    %403 = vmatprep.subr.mxu0 0.0
    %404 = vmatpush1.msra.mxu0 0.0
    %405 = vmatprep.subr.mxu0 0.0
    %406 = vmatpush1.msra.mxu0 0.0
    %407 = vmatprep.subr.mxu0 0.0
    %408 = vmatpush1.msra.mxu0 0.0
    %409 = vmatprep.subr.mxu0 0.0
    %410 = vmatpush1.msra.mxu0 0.0
    %411 = vmatprep.subr.mxu0 0.0
    %412 = vmatpush1.msra.mxu0 0.0
    %413 = vmatprep.subr.mxu0 0.0
    %414 = vmatpush1.msra.mxu0 0.0
    %415 = vmatprep.subr.mxu0 0.0
    %416 = vmatpush1.msra.mxu0 0.0
    %417 = vmatprep.subr.mxu0 0.0
    %418 = vmatpush1.msra.mxu0 0.0
    %419 = vmatprep.subr.mxu0 0.0
    %420 = vmatpush1.msra.mxu0 0.0
    %421 = vmatprep.subr.mxu0 0.0
    %422 = vmatpush1.msra.mxu0 0.0
    %423 = vmatprep.subr.mxu0 0.0
    %424 = vmatpush1.msra.mxu0 0.0
    %425 = vmatprep.subr.mxu0 0.0
    %426 = vmatpush1.msra.mxu0 0.0
    %427 = vmatprep.subr.mxu0 0.0
    %428 = vmatpush1.msra.mxu0 0.0
    %429 = vmatprep.subr.mxu0 0.0
    %430 = vmatpush1.msra.mxu0 0.0
    %431 = vmatprep.subr.mxu0 0.0
    %432 = vmatpush1.msra.mxu0 0.0
    %433 = vmatprep.mubr.f32.mxu0 0.0
    %434 = vmatmul.mubr.f32.gmra.mrb[0].mxu0 %v344
    %v435 = vpop.f32.mrb[0].mxu0
    %v436 = vadd.f32 %v367, %v435
    %v437 = vpop.f32.mrb[0].mxu0
    %438 = vmatprep.mubr.f32.mxu0 0.0
    %439 = vmatmul.mubr.f32.gmra.mrb[0].mxu0 %v345
    %v440 = vpop.f32.mrb[0].mxu0
    %v441 = vadd.f32 %v367, %v440
    %v442 = vpop.f32.mrb[0].mxu0
    %443 = vdwg.mxu0
    %v444 = vmax.f32 %v436, 0.0
    %v445 = vmax.f32 %v441, 0.0
    %v446 = vld [vmem:[#allocation10] sm:$0xff]
    %v447 = vld [vmem:[#allocation10 + $0x8] sm:$0xff]
    %v448 = vld [vmem:[#allocation10 + $0x10] sm:$0xff]
    %v449 = vld [vmem:[#allocation10 + $0x18] sm:$0xff]
    %v450 = vld [vmem:[#allocation10 + $0x20] sm:$0xff]
    %v451 = vld [vmem:[#allocation10 + $0x28] sm:$0xff]
    %v452 = vld [vmem:[#allocation10 + $0x30] sm:$0xff]
    %v453 = vld [vmem:[#allocation10 + $0x38] sm:$0xff]
    %v454 = vld [vmem:[#allocation10 + $0x40] sm:$0xff]
    %v455 = vld [vmem:[#allocation10 + $0x48] sm:$0xff]
    %v456 = vld [vmem:[#allocation10 + $0x50] sm:$0xff]
    %v457 = vld [vmem:[#allocation10 + $0x58] sm:$0xff]
    %v458 = vld [vmem:[#allocation10 + $0x60] sm:$0xff]
    %v459 = vld [vmem:[#allocation10 + $0x68] sm:$0xff]
    %v460 = vld [vmem:[#allocation10 + $0x70] sm:$0xff]
    %v461 = vld [vmem:[#allocation10 + $0x78] sm:$0xff]
    %v462 = vld [vmem:[%s8] sm:$0x1]
    %v464 = vlaneseq
    %v465 = vshrl.u32 %v464, 7
    %v466 = vsub.s32 0, %v465
    %v467 = vrot.slane %v462, %v466
    %469 = vmatprep.subr.mxu0 0.0
    %470 = vmatpush1.msra.mxu0 %v446
    %471 = vmatprep.subr.mxu0 0.0
    %472 = vmatpush1.msra.mxu0 %v447
    %473 = vmatprep.subr.mxu0 0.0
    %474 = vmatpush1.msra.mxu0 %v448
    %475 = vmatprep.subr.mxu0 0.0
    %476 = vmatpush1.msra.mxu0 %v449
    %477 = vmatprep.subr.mxu0 0.0
    %478 = vmatpush1.msra.mxu0 %v450
    %479 = vmatprep.subr.mxu0 0.0
    %480 = vmatpush1.msra.mxu0 %v451
    %481 = vmatprep.subr.mxu0 0.0
    %482 = vmatpush1.msra.mxu0 %v452
    %483 = vmatprep.subr.mxu0 0.0
    %484 = vmatpush1.msra.mxu0 %v453
    %485 = vmatprep.subr.mxu0 0.0
    %486 = vmatpush1.msra.mxu0 %v454
    %487 = vmatprep.subr.mxu0 0.0
    %488 = vmatpush1.msra.mxu0 %v455
    %489 = vmatprep.subr.mxu0 0.0
    %490 = vmatpush1.msra.mxu0 %v456
    %491 = vmatprep.subr.mxu0 0.0
    %492 = vmatpush1.msra.mxu0 %v457
    %493 = vmatprep.subr.mxu0 0.0
    %494 = vmatpush1.msra.mxu0 %v458
    %495 = vmatprep.subr.mxu0 0.0
    %496 = vmatpush1.msra.mxu0 %v459
    %497 = vmatprep.subr.mxu0 0.0
    %498 = vmatpush1.msra.mxu0 %v460
    %499 = vmatprep.subr.mxu0 0.0
    %500 = vmatpush1.msra.mxu0 %v461
    %501 = vmatprep.subr.mxu0 0.0
    %502 = vmatpush1.msra.mxu0 0.0
    %503 = vmatprep.subr.mxu0 0.0
    %504 = vmatpush1.msra.mxu0 0.0
    %505 = vmatprep.subr.mxu0 0.0
    %506 = vmatpush1.msra.mxu0 0.0
    %507 = vmatprep.subr.mxu0 0.0
    %508 = vmatpush1.msra.mxu0 0.0
    %509 = vmatprep.subr.mxu0 0.0
    %510 = vmatpush1.msra.mxu0 0.0
    %511 = vmatprep.subr.mxu0 0.0
    %512 = vmatpush1.msra.mxu0 0.0
    %513 = vmatprep.subr.mxu0 0.0
    %514 = vmatpush1.msra.mxu0 0.0
    %515 = vmatprep.subr.mxu0 0.0
    %516 = vmatpush1.msra.mxu0 0.0
    %517 = vmatprep.subr.mxu0 0.0
    %518 = vmatpush1.msra.mxu0 0.0
    %519 = vmatprep.subr.mxu0 0.0
    %520 = vmatpush1.msra.mxu0 0.0
    %521 = vmatprep.subr.mxu0 0.0
    %522 = vmatpush1.msra.mxu0 0.0
    %523 = vmatprep.subr.mxu0 0.0
    %524 = vmatpush1.msra.mxu0 0.0
    %525 = vmatprep.subr.mxu0 0.0
    %526 = vmatpush1.msra.mxu0 0.0
    %527 = vmatprep.subr.mxu0 0.0
    %528 = vmatpush1.msra.mxu0 0.0
    %529 = vmatprep.subr.mxu0 0.0
    %530 = vmatpush1.msra.mxu0 0.0
    %531 = vmatprep.subr.mxu0 0.0
    %532 = vmatpush1.msra.mxu0 0.0
    %533 = vmatprep.mubr.f32.mxu0 0.0
    %534 = vmatmul.mubr.f32.gmra.mrb[0].mxu0 %v444
    %v535 = vpop.f32.mrb[0].mxu0
    %v536 = vadd.f32 %v467, %v535
    %v537 = vpop.f32.mrb[0].mxu0
    %538 = vmatprep.mubr.f32.mxu0 0.0
    %539 = vmatmul.mubr.f32.gmra.mrb[0].mxu0 %v445
    %v540 = vpop.f32.mrb[0].mxu0
    %v541 = vadd.f32 %v467, %v540
    %v542 = vpop.f32.mrb[0].mxu0
    %543 = vdwg.mxu0
    %v544 = vmax.f32 %v536, 0.0
    %v545 = vmax.f32 %v541, 0.0
    %v546 = vld [vmem:[#allocation11] sm:$0xff]
    %v547 = vld [vmem:[#allocation11 + $0x8] sm:$0xff]
    %v548 = vld [vmem:[#allocation11 + $0x10] sm:$0xff]
    %v549 = vld [vmem:[#allocation11 + $0x18] sm:$0xff]
    %v550 = vld [vmem:[#allocation11 + $0x20] sm:$0xff]
    %v551 = vld [vmem:[#allocation11 + $0x28] sm:$0xff]
    %v552 = vld [vmem:[#allocation11 + $0x30] sm:$0xff]
    %v553 = vld [vmem:[#allocation11 + $0x38] sm:$0xff]
    %v554 = vld [vmem:[#allocation11 + $0x40] sm:$0xff]
    %v555 = vld [vmem:[#allocation11 + $0x48] sm:$0xff]
    %v556 = vld [vmem:[#allocation11 + $0x50] sm:$0xff]
    %v557 = vld [vmem:[#allocation11 + $0x58] sm:$0xff]
    %v558 = vld [vmem:[#allocation11 + $0x60] sm:$0xff]
    %v559 = vld [vmem:[#allocation11 + $0x68] sm:$0xff]
    %v560 = vld [vmem:[#allocation11 + $0x70] sm:$0xff]
    %v561 = vld [vmem:[#allocation11 + $0x78] sm:$0xff]
    %v562 = vld [vmem:[%s10] sm:$0x1]
    %v564 = vlaneseq
    %v565 = vshrl.u32 %v564, 7
    %v566 = vsub.s32 0, %v565
    %v567 = vrot.slane %v562, %v566
    %569 = vmatprep.subr.mxu0 0.0
    %570 = vmatpush1.msra.mxu0 %v546
    %571 = vmatprep.subr.mxu0 0.0
    %572 = vmatpush1.msra.mxu0 %v547
    %573 = vmatprep.subr.mxu0 0.0
    %574 = vmatpush1.msra.mxu0 %v548
    %575 = vmatprep.subr.mxu0 0.0
    %576 = vmatpush1.msra.mxu0 %v549
    %577 = vmatprep.subr.mxu0 0.0
    %578 = vmatpush1.msra.mxu0 %v550
    %579 = vmatprep.subr.mxu0 0.0
    %580 = vmatpush1.msra.mxu0 %v551
    %581 = vmatprep.subr.mxu0 0.0
    %582 = vmatpush1.msra.mxu0 %v552
    %583 = vmatprep.subr.mxu0 0.0
    %584 = vmatpush1.msra.mxu0 %v553
    %585 = vmatprep.subr.mxu0 0.0
    %586 = vmatpush1.msra.mxu0 %v554
    %587 = vmatprep.subr.mxu0 0.0
    %588 = vmatpush1.msra.mxu0 %v555
    %589 = vmatprep.subr.mxu0 0.0
    %590 = vmatpush1.msra.mxu0 %v556
    %591 = vmatprep.subr.mxu0 0.0
    %592 = vmatpush1.msra.mxu0 %v557
    %593 = vmatprep.subr.mxu0 0.0
    %594 = vmatpush1.msra.mxu0 %v558
    %595 = vmatprep.subr.mxu0 0.0
    %596 = vmatpush1.msra.mxu0 %v559
    %597 = vmatprep.subr.mxu0 0.0
    %598 = vmatpush1.msra.mxu0 %v560
    %599 = vmatprep.subr.mxu0 0.0
    %600 = vmatpush1.msra.mxu0 %v561
    %601 = vmatprep.subr.mxu0 0.0
    %602 = vmatpush1.msra.mxu0 0.0
    %603 = vmatprep.subr.mxu0 0.0
    %604 = vmatpush1.msra.mxu0 0.0
    %605 = vmatprep.subr.mxu0 0.0
    %606 = vmatpush1.msra.mxu0 0.0
    %607 = vmatprep.subr.mxu0 0.0
    %608 = vmatpush1.msra.mxu0 0.0
    %609 = vmatprep.subr.mxu0 0.0
    %610 = vmatpush1.msra.mxu0 0.0
    %611 = vmatprep.subr.mxu0 0.0
    %612 = vmatpush1.msra.mxu0 0.0
    %613 = vmatprep.subr.mxu0 0.0
    %614 = vmatpush1.msra.mxu0 0.0
    %615 = vmatprep.subr.mxu0 0.0
    %616 = vmatpush1.msra.mxu0 0.0
    %617 = vmatprep.subr.mxu0 0.0
    %618 = vmatpush1.msra.mxu0 0.0
    %619 = vmatprep.subr.mxu0 0.0
    %620 = vmatpush1.msra.mxu0 0.0
    %621 = vmatprep.subr.mxu0 0.0
    %622 = vmatpush1.msra.mxu0 0.0
    %623 = vmatprep.subr.mxu0 0.0
    %624 = vmatpush1.msra.mxu0 0.0
    %625 = vmatprep.subr.mxu0 0.0
    %626 = vmatpush1.msra.mxu0 0.0
    %627 = vmatprep.subr.mxu0 0.0
    %628 = vmatpush1.msra.mxu0 0.0
    %629 = vmatprep.subr.mxu0 0.0
    %630 = vmatpush1.msra.mxu0 0.0
    %631 = vmatprep.subr.mxu0 0.0
    %632 = vmatpush1.msra.mxu0 0.0
    %633 = vmatprep.mubr.f32.mxu0 0.0
    %634 = vmatmul.mubr.f32.gmra.mrb[0].mxu0 %v544
    %v635 = vpop.f32.mrb[0].mxu0
    %v636 = vadd.f32 %v567, %v635
    %v637 = vpop.f32.mrb[0].mxu0
    %638 = vmatprep.mubr.f32.mxu0 0.0
    %639 = vmatmul.mubr.f32.gmra.mrb[0].mxu0 %v545
    %v640 = vpop.f32.mrb[0].mxu0
    %v641 = vadd.f32 %v567, %v640
    %v642 = vpop.f32.mrb[0].mxu0
    %643 = vdwg.mxu0
    %v644 = vmax.f32 %v636, 0.0
    %v645 = vmax.f32 %v641, 0.0
    %v646 = vld [vmem:[#allocation13] sm:$0xff]
    %v647 = vld [vmem:[#allocation13 + $0x8] sm:$0xff]
    %v648 = vld [vmem:[#allocation13 + $0x10] sm:$0xff]
    %v649 = vld [vmem:[#allocation13 + $0x18] sm:$0xff]
    %v650 = vld [vmem:[#allocation13 + $0x20] sm:$0xff]
    %v651 = vld [vmem:[#allocation13 + $0x28] sm:$0xff]
    %v652 = vld [vmem:[#allocation13 + $0x30] sm:$0xff]
    %v653 = vld [vmem:[#allocation13 + $0x38] sm:$0xff]
    %v654 = vld [vmem:[#allocation13 + $0x40] sm:$0xff]
    %v655 = vld [vmem:[#allocation13 + $0x48] sm:$0xff]
    %v656 = vld [vmem:[#allocation13 + $0x50] sm:$0xff]
    %v657 = vld [vmem:[#allocation13 + $0x58] sm:$0xff]
    %v658 = vld [vmem:[#allocation13 + $0x60] sm:$0xff]
    %v659 = vld [vmem:[#allocation13 + $0x68] sm:$0xff]
    %v660 = vld [vmem:[#allocation13 + $0x70] sm:$0xff]
    %v661 = vld [vmem:[#allocation13 + $0x78] sm:$0xff]
    %v662 = vld [vmem:[#allocation13 + $0x80] sm:$0xff]
    %v663 = vld [vmem:[#allocation13 + $0x88] sm:$0xff]
    %v664 = vld [vmem:[#allocation13 + $0x90] sm:$0xff]
    %v665 = vld [vmem:[#allocation13 + $0x98] sm:$0xff]
    %v666 = vld [vmem:[#allocation13 + $0xa0] sm:$0xff]
    %v667 = vld [vmem:[#allocation13 + $0xa8] sm:$0xff]
    %v668 = vld [vmem:[#allocation13 + $0xb0] sm:$0xff]
    %v669 = vld [vmem:[#allocation13 + $0xb8] sm:$0xff]
    %v670 = vld [vmem:[#allocation13 + $0xc0] sm:$0xff]
    %v671 = vld [vmem:[#allocation13 + $0xc8] sm:$0xff]
    %v672 = vld [vmem:[#allocation13 + $0xd0] sm:$0xff]
    %v673 = vld [vmem:[#allocation13 + $0xd8] sm:$0xff]
    %v674 = vld [vmem:[#allocation13 + $0xe0] sm:$0xff]
    %v675 = vld [vmem:[#allocation13 + $0xe8] sm:$0xff]
    %v676 = vld [vmem:[#allocation13 + $0xf0] sm:$0xff]
    %v677 = vld [vmem:[#allocation13 + $0xf8] sm:$0xff]
    %v678 = vld [vmem:[#allocation13 + $0x100] sm:$0xff]
    %v679 = vld [vmem:[#allocation13 + $0x108] sm:$0xff]
    %v680 = vld [vmem:[#allocation13 + $0x110] sm:$0xff]
    %v681 = vld [vmem:[#allocation13 + $0x118] sm:$0xff]
    %v682 = vld [vmem:[#allocation13 + $0x120] sm:$0xff]
    %v683 = vld [vmem:[#allocation13 + $0x128] sm:$0xff]
    %v684 = vld [vmem:[#allocation13 + $0x130] sm:$0xff]
    %v685 = vld [vmem:[#allocation13 + $0x138] sm:$0xff]
    %v686 = vld [vmem:[#allocation13 + $0x140] sm:$0xff]
    %v687 = vld [vmem:[#allocation13 + $0x148] sm:$0xff]
    %v688 = vld [vmem:[#allocation13 + $0x150] sm:$0xff]
    %v689 = vld [vmem:[#allocation13 + $0x158] sm:$0xff]
    %v690 = vld [vmem:[#allocation13 + $0x160] sm:$0xff]
    %v691 = vld [vmem:[#allocation13 + $0x168] sm:$0xff]
    %v692 = vld [vmem:[#allocation13 + $0x170] sm:$0xff]
    %v693 = vld [vmem:[#allocation13 + $0x178] sm:$0xff]
    %v694 = vld [vmem:[%s12] sm:$0x7]
    %v696 = vlaneseq
    %v697 = vshrl.u32 %v696, 7
    %v698 = vsub.s32 0, %v697
    %v699 = vrot.slane %v694, %v698
    %v700 = vlaneseq
    %v701 = vshrl.u32 %v700, 7
    %v702 = vsub.s32 1, %v701
    %v703 = vrot.slane %v694, %v702
    %v704 = vlaneseq
    %v705 = vshrl.u32 %v704, 7
    %v706 = vsub.s32 2, %v705
    %v707 = vrot.slane %v694, %v706
    %711 = vmatprep.subr.mxu0 %v647
    %712 = vmatpush1.msra.mxu0 %v646
    %713 = vmatprep.subr.mxu0 %v650
    %714 = vmatpush1.msra.mxu0 %v649
    %715 = vmatprep.subr.mxu0 %v653
    %716 = vmatpush1.msra.mxu0 %v652
    %717 = vmatprep.subr.mxu0 %v656
    %718 = vmatpush1.msra.mxu0 %v655
    %719 = vmatprep.subr.mxu0 %v659
    %720 = vmatpush1.msra.mxu0 %v658
    %721 = vmatprep.subr.mxu0 %v662
    %722 = vmatpush1.msra.mxu0 %v661
    %723 = vmatprep.subr.mxu0 %v665
    %724 = vmatpush1.msra.mxu0 %v664
    %725 = vmatprep.subr.mxu0 %v668
    %726 = vmatpush1.msra.mxu0 %v667
    %727 = vmatprep.subr.mxu0 %v671
    %728 = vmatpush1.msra.mxu0 %v670
    %729 = vmatprep.subr.mxu0 %v674
    %730 = vmatpush1.msra.mxu0 %v673
    %731 = vmatprep.subr.mxu0 %v677
    %732 = vmatpush1.msra.mxu0 %v676
    %733 = vmatprep.subr.mxu0 %v680
    %734 = vmatpush1.msra.mxu0 %v679
    %735 = vmatprep.subr.mxu0 %v683
    %736 = vmatpush1.msra.mxu0 %v682
    %737 = vmatprep.subr.mxu0 %v686
    %738 = vmatpush1.msra.mxu0 %v685
    %739 = vmatprep.subr.mxu0 %v689
    %740 = vmatpush1.msra.mxu0 %v688
    %741 = vmatprep.subr.mxu0 %v692
    %742 = vmatpush1.msra.mxu0 %v691
    %743 = vmatprep.subr.mxu0 0.0
    %744 = vmatpush1.msra.mxu0 0.0
    %745 = vmatprep.subr.mxu0 0.0
    %746 = vmatpush1.msra.mxu0 0.0
    %747 = vmatprep.subr.mxu0 0.0
    %748 = vmatpush1.msra.mxu0 0.0
    %749 = vmatprep.subr.mxu0 0.0
    %750 = vmatpush1.msra.mxu0 0.0
    %751 = vmatprep.subr.mxu0 0.0
    %752 = vmatpush1.msra.mxu0 0.0
    %753 = vmatprep.subr.mxu0 0.0
    %754 = vmatpush1.msra.mxu0 0.0
    %755 = vmatprep.subr.mxu0 0.0
    %756 = vmatpush1.msra.mxu0 0.0
    %757 = vmatprep.subr.mxu0 0.0
    %758 = vmatpush1.msra.mxu0 0.0
    %759 = vmatprep.subr.mxu0 0.0
    %760 = vmatpush1.msra.mxu0 0.0
    %761 = vmatprep.subr.mxu0 0.0
    %762 = vmatpush1.msra.mxu0 0.0
    %763 = vmatprep.subr.mxu0 0.0
    %764 = vmatpush1.msra.mxu0 0.0
    %765 = vmatprep.subr.mxu0 0.0
    %766 = vmatpush1.msra.mxu0 0.0
    %767 = vmatprep.subr.mxu0 0.0
    %768 = vmatpush1.msra.mxu0 0.0
    %769 = vmatprep.subr.mxu0 0.0
    %770 = vmatpush1.msra.mxu0 0.0
    %771 = vmatprep.subr.mxu0 0.0
    %772 = vmatpush1.msra.mxu0 0.0
    %773 = vmatprep.subr.mxu0 0.0
    %774 = vmatpush1.msra.mxu0 0.0
    %775 = vmatprep.mubr.f32.mxu0 0.0
    %776 = vmatmul.mubr.f32.gmra.mrb[0].mxu0 %v644
    %v777 = vpop.f32.mrb[0].mxu0
    %v778 = vadd.f32 %v699, %v777
    %v779 = vpop.f32.mrb[0].mxu0
    %v780 = vadd.f32 %v703, %v779
    %781 = vmatprep.mubr.f32.mxu0 0.0
    %782 = vmatmul.mubr.f32.gmra.mrb[0].mxu0 %v645
    %v783 = vpop.f32.mrb[0].mxu0
    %v784 = vadd.f32 %v699, %v783
    %v785 = vpop.f32.mrb[0].mxu0
    %v786 = vadd.f32 %v703, %v785
    %787 = vdwg.mxu0
    %788 = vmatprep.subr.mxu0 0.0
    %789 = vmatpush1.msra.mxu0 %v648
    %790 = vmatprep.subr.mxu0 0.0
    %791 = vmatpush1.msra.mxu0 %v651
    %792 = vmatprep.subr.mxu0 0.0
    %793 = vmatpush1.msra.mxu0 %v654
    %794 = vmatprep.subr.mxu0 0.0
    %795 = vmatpush1.msra.mxu0 %v657
    %796 = vmatprep.subr.mxu0 0.0
    %797 = vmatpush1.msra.mxu0 %v660
    %798 = vmatprep.subr.mxu0 0.0
    %799 = vmatpush1.msra.mxu0 %v663
    %800 = vmatprep.subr.mxu0 0.0
    %801 = vmatpush1.msra.mxu0 %v666
    %802 = vmatprep.subr.mxu0 0.0
    %803 = vmatpush1.msra.mxu0 %v669
    %804 = vmatprep.subr.mxu0 0.0
    %805 = vmatpush1.msra.mxu0 %v672
    %806 = vmatprep.subr.mxu0 0.0
    %807 = vmatpush1.msra.mxu0 %v675
    %808 = vmatprep.subr.mxu0 0.0
    %809 = vmatpush1.msra.mxu0 %v678
    %810 = vmatprep.subr.mxu0 0.0
    %811 = vmatpush1.msra.mxu0 %v681
    %812 = vmatprep.subr.mxu0 0.0
    %813 = vmatpush1.msra.mxu0 %v684
    %814 = vmatprep.subr.mxu0 0.0
    %815 = vmatpush1.msra.mxu0 %v687
    %816 = vmatprep.subr.mxu0 0.0
    %817 = vmatpush1.msra.mxu0 %v690
    %818 = vmatprep.subr.mxu0 0.0
    %819 = vmatpush1.msra.mxu0 %v693
    %820 = vmatprep.subr.mxu0 0.0
    %821 = vmatpush1.msra.mxu0 0.0
    %822 = vmatprep.subr.mxu0 0.0
    %823 = vmatpush1.msra.mxu0 0.0
    %824 = vmatprep.subr.mxu0 0.0
    %825 = vmatpush1.msra.mxu0 0.0
    %826 = vmatprep.subr.mxu0 0.0
    %827 = vmatpush1.msra.mxu0 0.0
    %828 = vmatprep.subr.mxu0 0.0
    %829 = vmatpush1.msra.mxu0 0.0
    %830 = vmatprep.subr.mxu0 0.0
    %831 = vmatpush1.msra.mxu0 0.0
    %832 = vmatprep.subr.mxu0 0.0
    %833 = vmatpush1.msra.mxu0 0.0
    %834 = vmatprep.subr.mxu0 0.0
    %835 = vmatpush1.msra.mxu0 0.0
    %836 = vmatprep.subr.mxu0 0.0
    %837 = vmatpush1.msra.mxu0 0.0
    %838 = vmatprep.subr.mxu0 0.0
    %839 = vmatpush1.msra.mxu0 0.0
    %840 = vmatprep.subr.mxu0 0.0
    %841 = vmatpush1.msra.mxu0 0.0
    %842 = vmatprep.subr.mxu0 0.0
    %843 = vmatpush1.msra.mxu0 0.0
    %844 = vmatprep.subr.mxu0 0.0
    %845 = vmatpush1.msra.mxu0 0.0
    %846 = vmatprep.subr.mxu0 0.0
    %847 = vmatpush1.msra.mxu0 0.0
    %848 = vmatprep.subr.mxu0 0.0
    %849 = vmatpush1.msra.mxu0 0.0
    %850 = vmatprep.subr.mxu0 0.0
    %851 = vmatpush1.msra.mxu0 0.0
    %852 = vmatprep.mubr.f32.mxu0 0.0
    %853 = vmatmul.mubr.f32.gmra.mrb[0].mxu0 %v644
    %v854 = vpop.f32.mrb[0].mxu0
    %v855 = vadd.f32 %v707, %v854
    %v856 = vpop.f32.mrb[0].mxu0
    %857 = vmatprep.mubr.f32.mxu0 0.0
    %858 = vmatmul.mubr.f32.gmra.mrb[0].mxu0 %v645
    %v859 = vpop.f32.mrb[0].mxu0
    %v860 = vadd.f32 %v707, %v859
    %v861 = vpop.f32.mrb[0].mxu0
    %862 = vdwg.mxu0
    %v863 = vmax.f32 %v778, 0.0
    %v864 = vmax.f32 %v784, 0.0
    %v865 = vand.u32 2147483647, %v778
    %v866 = vand.u32 2147483647, %v784
    %v867 = vsub.f32 0.0, %v865
    %v868 = vsub.f32 0.0, %v866
    %v869 = vmul.f32 %v867, 1.442695
    %v870 = vpow.pop %v869
    %v871 = vmul.f32 %v868, 1.442695
    %v872 = vpow.pop %v871
    %v873 = vadd.f32 %v870, 1.0
    %v874 = vlog2.pop %v873
    %v875 = vmul.f32 %v874, 0.6931472
    %v876 = vmul.f32 -0.5, %v870
    %v877 = vadd.f32 %v876, 1.0
    %v878 = vmul.f32 %v877, %v870
    %v879 = vand.u32 2147483647, %v870
    %vm880 = vcmp.lt.f32.partialorder %v879, 0.0004427343
    %v881 = vsel %vm880, %v878, %v875
    %v882 = vadd.f32 %v872, 1.0
    %v883 = vlog2.pop %v882
    %v884 = vmul.f32 %v883, 0.6931472
    %v885 = vmul.f32 -0.5, %v872
    %v886 = vadd.f32 %v885, 1.0
    %v887 = vmul.f32 %v886, %v872
    %v888 = vand.u32 2147483647, %v872
    %vm889 = vcmp.lt.f32.partialorder %v888, 0.0004427343
    %v890 = vsel %vm889, %v887, %v884
    %v891 = vadd.f32 %v863, %v881
    %v892 = vadd.f32 %v864, %v890
    %v893 = vadd.f32 %v891, 1e-06
    %v894 = vadd.f32 %v892, 1e-06
    %895 = vst [vmem:[#allocation14] sm:$0xff] %v893
    %896 = vst [vmem:[#allocation14 + $0x8] sm:$0xff] %v894
    %v897 = vmax.f32 %v780, 0.0
    %v898 = vmax.f32 %v786, 0.0
    %v899 = vand.u32 2147483647, %v780
    %v900 = vand.u32 2147483647, %v786
    %v901 = vsub.f32 0.0, %v899
    %v902 = vsub.f32 0.0, %v900
    %v903 = vmul.f32 %v901, 1.442695
    %v904 = vpow.pop %v903
    %v905 = vmul.f32 %v902, 1.442695
    %v906 = vpow.pop %v905
    %v907 = vadd.f32 %v904, 1.0
    %v908 = vlog2.pop %v907
    %v909 = vmul.f32 %v908, 0.6931472
    %v910 = vmul.f32 -0.5, %v904
    %v911 = vadd.f32 %v910, 1.0
    %v912 = vmul.f32 %v911, %v904
    %v913 = vand.u32 2147483647, %v904
    %vm914 = vcmp.lt.f32.partialorder %v913, 0.0004427343
    %v915 = vsel %vm914, %v912, %v909
    %v916 = vadd.f32 %v906, 1.0
    %v917 = vlog2.pop %v916
    %v918 = vmul.f32 %v917, 0.6931472
    %v919 = vmul.f32 -0.5, %v906
    %v920 = vadd.f32 %v919, 1.0
    %v921 = vmul.f32 %v920, %v906
    %v922 = vand.u32 2147483647, %v906
    %vm923 = vcmp.lt.f32.partialorder %v922, 0.0004427343
    %v924 = vsel %vm923, %v921, %v918
    %v925 = vadd.f32 %v897, %v915
    %v926 = vadd.f32 %v898, %v924
    %v927 = vadd.f32 %v925, 1e-06
    %v928 = vadd.f32 %v926, 1e-06
    %929 = vst [vmem:[#allocation15] sm:$0xff] %v927
    %930 = vst [vmem:[#allocation15 + $0x8] sm:$0xff] %v928
    %v931 = vmul.f32 %v855, 0.5
    %v932 = vmul.f32 %v860, 0.5
    %v933 = vtanh.pop %v931
    %v934 = vtanh.pop %v932
    %v935 = vadd.f32 %v933, 1.0
    %v936 = vadd.f32 %v934, 1.0
    %v937 = vmul.f32 %v935, 0.5
    %v938 = vmul.f32 %v936, 0.5
    %939 = vst [vmem:[#allocation17] sm:$0xff] %v937
    %940 = vst [vmem:[#allocation17 + $0x8] sm:$0xff] %v938
    // Predicated region
    $region82: #{tpu_custom_call.1} parent=1 // pred_check
      _
    $region83: #{tpu_custom_call.1} parent=1 // pred_check_branch
      %942 = sbr.rel (0) target = $region85
    $region84: #{tpu_custom_call.1} parent=1 // pred_region
      %s944 = ssub.s32 256, 256
      %945 = vsyncadd [#allocation4], %s944
      %s946 = sshll.u32 [#allocation14], 4
      %s947 = int_to_ptr.vmem [resolvable:$true] %s946
      %952 = dma.vmem_to_hbm [thread:$0]  %s947, 256, %s13, [#allocation4], 128, 128, 8
    $region85: #{tpu_custom_call.1} parent=1 // pred_fallthru
      _
    // Predicated region
    $region86: #{tpu_custom_call.1} parent=1 // pred_check
      _
    $region87: #{tpu_custom_call.1} parent=1 // pred_check_branch
      %954 = sbr.rel (0) target = $region89
    $region88: #{tpu_custom_call.1} parent=1 // pred_region
      %s956 = ssub.s32 256, 256
      %957 = vsyncadd [#allocation16], %s956
      %s958 = sshll.u32 [#allocation15], 4
      %s959 = int_to_ptr.vmem [resolvable:$true] %s958
      %964 = dma.vmem_to_hbm [thread:$0]  %s959, 256, %s14, [#allocation16], 128, 128, 8
    $region89: #{tpu_custom_call.1} parent=1 // pred_fallthru
      _
    // Predicated region
    $region90: #{tpu_custom_call.1} parent=1 // pred_check
      _
    $region91: #{tpu_custom_call.1} parent=1 // pred_check_branch
      %966 = sbr.rel (0) target = $region93
    $region92: #{tpu_custom_call.1} parent=1 // pred_region
      %s968 = ssub.s32 256, 256
      %969 = vsyncadd [#allocation16], %s968
      %s970 = sshll.u32 [#allocation17], 4
      %s971 = int_to_ptr.vmem [resolvable:$true] %s970
      %976 = dma.vmem_to_hbm [thread:$0]  %s971, 256, %s15, [#allocation16], 128, 128, 8
    $region93: #{tpu_custom_call.1} parent=1 // pred_fallthru
      _
    // Predicated region
    $region94: #{tpu_custom_call.1} parent=1 // pred_check
      _
    $region95: #{tpu_custom_call.1} parent=1 // pred_check_branch
      %978 = sbr.rel (0) target = $region97
    $region96: #{tpu_custom_call.1} parent=1 // pred_region
      %979 = dma.done [#allocation4], 256
    $region97: #{tpu_custom_call.1} parent=1 // pred_fallthru
      _
    // Predicated region
    $region98: #{tpu_custom_call.1} parent=1 // pred_check
      _
    $region99: #{tpu_custom_call.1} parent=1 // pred_check_branch
      %981 = sbr.rel (0) target = $region101
    $region100: #{tpu_custom_call.1} parent=1 // pred_region
      %982 = dma.done [#allocation16], 256
    $region101: #{tpu_custom_call.1} parent=1 // pred_fallthru
      _
    // Predicated region
    $region102: #{tpu_custom_call.1} parent=1 // pred_check
      _
    $region103: #{tpu_custom_call.1} parent=1 // pred_check_branch
      %984 = sbr.rel (0) target = $region105
    $region104: #{tpu_custom_call.1} parent=1 // pred_region
      %985 = dma.done [#allocation16], 256
    $region105: #{tpu_custom_call.1} parent=1 // pred_fallthru
      _
    %986 = vsyncpa [#allocation3], 1
    %987 = vsyncpa [#allocation6], 1
    %988 = vsyncpa [#allocation9], 1
    %989 = vsyncpa [#allocation12], 1
    %990 = vsyncpa [#allocation4], 1
    %991 = vsyncpa [#allocation16], 1

// kernel: tpu_custom_call.1
$region0: #{tpu_custom_call.1}
  #allocation0 [shape = 'u32[]', space=smem, size = 0x4, offset = 0x4, fixed_abs, tag = 'smem constant byte address 0x4 - core index']
  #allocation1 [shape = 'u32[144,128]{1,0:T(1,128)}', space=vmem, size = 0x12000, scoped, tag = 'internal scratch']
  %s0 = inlined_call_operand.hbm [shape: f32[16,128], index: 0, kind: input, shape index: {}]
  %s1 = inlined_call_operand.hbm [shape: f32[128,128], index: 1, kind: input, shape index: {}]
  %s2 = inlined_call_operand.vmem [shape: f32[1,128], index: 2, kind: input, shape index: {}]
  %s3 = inlined_call_operand.hbm [shape: f32[128,128], index: 3, kind: input, shape index: {}]
  %s4 = inlined_call_operand.vmem [shape: f32[1,128], index: 4, kind: input, shape index: {}]
  %s5 = inlined_call_operand.hbm [shape: f32[128,128], index: 5, kind: input, shape index: {}]
  %s6 = inlined_call_operand.vmem [shape: f32[1,128], index: 6, kind: input, shape index: {}]
  %s7 = inlined_call_operand.hbm [shape: f32[128,128], index: 7, kind: input, shape index: {}]
  %s8 = inlined_call_operand.vmem [shape: f32[1,128], index: 8, kind: input, shape index: {}]
  %s9 = inlined_call_operand.hbm [shape: f32[128,128], index: 9, kind: input, shape index: {}]
  %s10 = inlined_call_operand.vmem [shape: f32[1,128], index: 10, kind: input, shape index: {}]
  %s11 = inlined_call_operand.hbm [shape: f32[128,384], index: 11, kind: input, shape index: {}]
  %s12 = inlined_call_operand.vmem [shape: f32[1,384], index: 12, kind: input, shape index: {}]
  %s13 = inlined_call_operand.hbm [shape: f32[16,128], index: 13, kind: output, shape index: {0}]
  %s14 = inlined_call_operand.hbm [shape: f32[16,128], index: 14, kind: output, shape index: {1}]
  %s15 = inlined_call_operand.hbm [shape: f32[16,128], index: 15, kind: output, shape index: {2}]
  %16 = xla_tuple %s13, %s14, %s15
  %s17 = sld [smem:[#allocation0]]
  $region106: #{tpu_custom_call.1} parent=0
    _
  %s19 = ssub.s32 1, %s17
  %s20 = scalar_select 0, %s19, %s17
  $region1: #{tpu_custom_call.1} parent=0
    #allocation2 [shape = 'u8[8192]{0}', space=vmem, size = 0x2000, scoped, tag = 'input window, operand 0, single buffered']
    #allocation3 [shape = 's32[1]{0}', space=sflag, size = 0x4, scoped, tag = 'scoped memory for tpu_custom_call.1']
    #allocation4 [shape = 's32[1]{0}', space=sflag, size = 0x4, scoped, tag = 'scoped memory for tpu_custom_call.1']
    #allocation5 [shape = 'u8[65536]{0}', space=vmem, size = 0x10000, scoped, tag = 'input window, operand 1, single buffered']
    #allocation6 [shape = 's32[1]{0}', space=sflag, size = 0x4, scoped, tag = 'scoped memory for tpu_custom_call.1']
    #allocation7 [shape = 'u8[65536]{0}', space=vmem, size = 0x10000, scoped, tag = 'input window, operand 3, single buffered']
    #allocation8 [shape = 'u8[65536]{0}', space=vmem, size = 0x10000, scoped, tag = 'input window, operand 5, single buffered']
    #allocation9 [shape = 's32[1]{0}', space=sflag, size = 0x4, scoped, tag = 'scoped memory for tpu_custom_call.1']
    #allocation10 [shape = 'u8[65536]{0}', space=vmem, size = 0x10000, scoped, tag = 'input window, operand 7, single buffered']
    #allocation11 [shape = 'u8[65536]{0}', space=vmem, size = 0x10000, scoped, tag = 'input window, operand 9, single buffered']
    #allocation12 [shape = 's32[1]{0}', space=sflag, size = 0x4, scoped, tag = 'scoped memory for tpu_custom_call.1']
    #allocation13 [shape = 'u8[196608]{0}', space=vmem, size = 0x30000, scoped, tag = 'input window, operand 11, single buffered']
    #allocation14 [shape = 'u8[8192]{0}', space=vmem, size = 0x2000, scoped, tag = 'output window, operand 0, single buffered']
    #allocation15 [shape = 'u8[8192]{0}', space=vmem, size = 0x2000, scoped, tag = 'output window, operand 1, single buffered']
    #allocation16 [shape = 's32[1]{0}', space=sflag, size = 0x4, scoped, tag = 'scoped memory for tpu_custom_call.1']
    #allocation17 [shape = 'u8[8192]{0}', space=vmem, size = 0x2000, scoped, tag = 'output window, operand 2, single buffered']
    %21 = vsyncpa [#allocation3], 0
    %22 = vsyncpa [#allocation6], 0
    %23 = vsyncpa [#allocation9], 0
    %24 = vsyncpa [#allocation12], 0
    %25 = vsyncpa [#allocation4], 0
    %26 = vsyncpa [#allocation16], 0
    // Predicated region
    $region2: #{tpu_custom_call.1} parent=1 // pred_check
      _
    $region3: #{tpu_custom_call.1} parent=1 // pred_check_branch
      %28 = sbr.rel (0) target = $region5
    $region4: #{tpu_custom_call.1} parent=1 // pred_region
      %s30 = ssub.s32 256, 256
      %31 = vsyncadd [#allocation3], %s30
      %s32 = sshll.u32 [#allocation2], 4
      %s33 = int_to_ptr.vmem [resolvable:$true] %s32
      %38 = dma.hbm_to_vmem [thread:$0]  %s0, 256, %s33, [#allocation3], 128, 128, 8
    $region5: #{tpu_custom_call.1} parent=1 // pred_fallthru
      _
    // Predicated region
    $region6: #{tpu_custom_call.1} parent=1 // pred_check
      _
    $region7: #{tpu_custom_call.1} parent=1 // pred_check_branch
      %40 = sbr.rel (0) target = $region9
    $region8: #{tpu_custom_call.1} parent=1 // pred_region
      %s42 = ssub.s32 2048, 2048
      %43 = vsyncadd [#allocation6], %s42
      %s44 = sshll.u32 [#allocation5], 4
      %s45 = int_to_ptr.vmem [resolvable:$true] %s44
      %50 = dma.hbm_to_vmem [thread:$0]  %s1, 2048, %s45, [#allocation6], 128, 128, 8
    $region9: #{tpu_custom_call.1} parent=1 // pred_fallthru
      _
    // Predicated region
    $region10: #{tpu_custom_call.1} parent=1 // pred_check
      _
    $region11: #{tpu_custom_call.1} parent=1 // pred_check_branch
      %52 = sbr.rel (0) target = $region13
    $region12: #{tpu_custom_call.1} parent=1 // pred_region
      _
    $region13: #{tpu_custom_call.1} parent=1 // pred_fallthru
      _
    // Predicated region
    $region14: #{tpu_custom_call.1} parent=1 // pred_check
      _
    $region15: #{tpu_custom_call.1} parent=1 // pred_check_branch
      %54 = sbr.rel (0) target = $region17
    $region16: #{tpu_custom_call.1} parent=1 // pred_region
      %s56 = ssub.s32 2048, 2048
      %57 = vsyncadd [#allocation6], %s56
      %s58 = sshll.u32 [#allocation7], 4
      %s59 = int_to_ptr.vmem [resolvable:$true] %s58
      %64 = dma.hbm_to_vmem [thread:$0]  %s3, 2048, %s59, [#allocation6], 128, 128, 8
    $region17: #{tpu_custom_call.1} parent=1 // pred_fallthru
      _
    // Predicated region
    $region18: #{tpu_custom_call.1} parent=1 // pred_check
      _
    $region19: #{tpu_custom_call.1} parent=1 // pred_check_branch
      %66 = sbr.rel (0) target = $region21
    $region20: #{tpu_custom_call.1} parent=1 // pred_region
      _
    $region21: #{tpu_custom_call.1} parent=1 // pred_fallthru
      _
    // Predicated region
    $region22: #{tpu_custom_call.1} parent=1 // pred_check
      _
    $region23: #{tpu_custom_call.1} parent=1 // pred_check_branch
      %68 = sbr.rel (0) target = $region25
    $region24: #{tpu_custom_call.1} parent=1 // pred_region
      %s70 = ssub.s32 2048, 2048
      %71 = vsyncadd [#allocation9], %s70
      %s72 = sshll.u32 [#allocation8], 4
      %s73 = int_to_ptr.vmem [resolvable:$true] %s72
      %78 = dma.hbm_to_vmem [thread:$0]  %s5, 2048, %s73, [#allocation9], 128, 128, 8
    $region25: #{tpu_custom_call.1} parent=1 // pred_fallthru
      _
    // Predicated region
    $region26: #{tpu_custom_call.1} parent=1 // pred_check
      _
    $region27: #{tpu_custom_call.1} parent=1 // pred_check_branch
      %80 = sbr.rel (0) target = $region29
    $region28: #{tpu_custom_call.1} parent=1 // pred_region
      _
    $region29: #{tpu_custom_call.1} parent=1 // pred_fallthru
      _
    // Predicated region
    $region30: #{tpu_custom_call.1} parent=1 // pred_check
      _
    $region31: #{tpu_custom_call.1} parent=1 // pred_check_branch
      %82 = sbr.rel (0) target = $region33
    $region32: #{tpu_custom_call.1} parent=1 // pred_region
      %s84 = ssub.s32 2048, 2048
      %85 = vsyncadd [#allocation9], %s84
      %s86 = sshll.u32 [#allocation10], 4
      %s87 = int_to_ptr.vmem [resolvable:$true] %s86
      %92 = dma.hbm_to_vmem [thread:$0]  %s7, 2048, %s87, [#allocation9], 128, 128, 8
    $region33: #{tpu_custom_call.1} parent=1 // pred_fallthru
      _
    // Predicated region
    $region34: #{tpu_custom_call.1} parent=1 // pred_check
      _
    $region35: #{tpu_custom_call.1} parent=1 // pred_check_branch
      %94 = sbr.rel (0) target = $region37
    $region36: #{tpu_custom_call.1} parent=1 // pred_region
      _
    $region37: #{tpu_custom_call.1} parent=1 // pred_fallthru
      _
    // Predicated region
    $region38: #{tpu_custom_call.1} parent=1 // pred_check
      _
    $region39: #{tpu_custom_call.1} parent=1 // pred_check_branch
      %96 = sbr.rel (0) target = $region41
    $region40: #{tpu_custom_call.1} parent=1 // pred_region
      %s98 = ssub.s32 2048, 2048
      %99 = vsyncadd [#allocation12], %s98
      %s100 = sshll.u32 [#allocation11], 4
      %s101 = int_to_ptr.vmem [resolvable:$true] %s100
      %106 = dma.hbm_to_vmem [thread:$0]  %s9, 2048, %s101, [#allocation12], 128, 128, 8
    $region41: #{tpu_custom_call.1} parent=1 // pred_fallthru
      _
    // Predicated region
    $region42: #{tpu_custom_call.1} parent=1 // pred_check
      _
    $region43: #{tpu_custom_call.1} parent=1 // pred_check_branch
      %108 = sbr.rel (0) target = $region45
    $region44: #{tpu_custom_call.1} parent=1 // pred_region
      _
    $region45: #{tpu_custom_call.1} parent=1 // pred_fallthru
      _
    // Predicated region
    $region46: #{tpu_custom_call.1} parent=1 // pred_check
      _
    $region47: #{tpu_custom_call.1} parent=1 // pred_check_branch
      %110 = sbr.rel (0) target = $region49
    $region48: #{tpu_custom_call.1} parent=1 // pred_region
      %s112 = ssub.s32 6144, 6144
      %113 = vsyncadd [#allocation12], %s112
      %s114 = sshll.u32 [#allocation13], 4
      %s115 = int_to_ptr.vmem [resolvable:$true] %s114
      %120 = dma.hbm_to_vmem [thread:$0]  %s11, 6144, %s115, [#allocation12], 384, 384, 24
    $region49: #{tpu_custom_call.1} parent=1 // pred_fallthru
      _
    // Predicated region
    $region50: #{tpu_custom_call.1} parent=1 // pred_check
      _
    $region51: #{tpu_custom_call.1} parent=1 // pred_check_branch
      %122 = sbr.rel (0) target = $region53
    $region52: #{tpu_custom_call.1} parent=1 // pred_region
      _
    $region53: #{tpu_custom_call.1} parent=1 // pred_fallthru
      _
    // Predicated region
    $region54: #{tpu_custom_call.1} parent=1 // pred_check
      _
    $region55: #{tpu_custom_call.1} parent=1 // pred_check_branch
      %124 = sbr.rel (0) target = $region57
    $region56: #{tpu_custom_call.1} parent=1 // pred_region
      %125 = dma.done [#allocation3], 256
    $region57: #{tpu_custom_call.1} parent=1 // pred_fallthru
      _
    // Predicated region
    $region58: #{tpu_custom_call.1} parent=1 // pred_check
      _
    $region59: #{tpu_custom_call.1} parent=1 // pred_check_branch
      %127 = sbr.rel (0) target = $region61
    $region60: #{tpu_custom_call.1} parent=1 // pred_region
      %128 = dma.done [#allocation6], 2048
    $region61: #{tpu_custom_call.1} parent=1 // pred_fallthru
      _
    // Predicated region
    $region62: #{tpu_custom_call.1} parent=1 // pred_check
      _
    $region63: #{tpu_custom_call.1} parent=1 // pred_check_branch
      %130 = sbr.rel (0) target = $region65
    $region64: #{tpu_custom_call.1} parent=1 // pred_region
      %131 = dma.done [#allocation6], 2048
    $region65: #{tpu_custom_call.1} parent=1 // pred_fallthru
      _
    // Predicated region
    $region66: #{tpu_custom_call.1} parent=1 // pred_check
      _
    $region67: #{tpu_custom_call.1} parent=1 // pred_check_branch
      %133 = sbr.rel (0) target = $region69
    $region68: #{tpu_custom_call.1} parent=1 // pred_region
      %134 = dma.done [#allocation9], 2048
    $region69: #{tpu_custom_call.1} parent=1 // pred_fallthru
      _
    // Predicated region
    $region70: #{tpu_custom_call.1} parent=1 // pred_check
      _
    $region71: #{tpu_custom_call.1} parent=1 // pred_check_branch
      %136 = sbr.rel (0) target = $region73
    $region72: #{tpu_custom_call.1} parent=1 // pred_region
      %137 = dma.done [#allocation9], 2048
    $region73: #{tpu_custom_call.1} parent=1 // pred_fallthru
      _
    // Predicated region
    $region74: #{tpu_custom_call.1} parent=1 // pred_check
      _
    $region75: #{tpu_custom_call.1} parent=1 // pred_check_branch
      %139 = sbr.rel (0) target = $region77
    $region76: #{tpu_custom_call.1} parent=1 // pred_region
      %140 = dma.done [#allocation12], 2048
    $region77: #{tpu_custom_call.1} parent=1 // pred_fallthru
      _
    // Predicated region
    $region78: #{tpu_custom_call.1} parent=1 // pred_check
      _
    $region79: #{tpu_custom_call.1} parent=1 // pred_check_branch
      %142 = sbr.rel (0) target = $region81
    $region80: #{tpu_custom_call.1} parent=1 // pred_region
      %143 = dma.done [#allocation12], 6144
    $region81: #{tpu_custom_call.1} parent=1 // pred_fallthru
      _
    %v144 = vld [vmem:[#allocation2] sm:$0xff]
    %v145 = vld [vmem:[#allocation2 + $0x8] sm:$0xff]
    %v146 = vld [vmem:[#allocation5] sm:$0xff]
    %v147 = vld [vmem:[#allocation5 + $0x8] sm:$0xff]
    %v148 = vld [vmem:[#allocation5 + $0x10] sm:$0xff]
    %v149 = vld [vmem:[#allocation5 + $0x18] sm:$0xff]
    %v150 = vld [vmem:[#allocation5 + $0x20] sm:$0xff]
    %v151 = vld [vmem:[#allocation5 + $0x28] sm:$0xff]
    %v152 = vld [vmem:[#allocation5 + $0x30] sm:$0xff]
    %v153 = vld [vmem:[#allocation5 + $0x38] sm:$0xff]
    %v154 = vld [vmem:[#allocation5 + $0x40] sm:$0xff]
    %v155 = vld [vmem:[#allocation5 + $0x48] sm:$0xff]
    %v156 = vld [vmem:[#allocation5 + $0x50] sm:$0xff]
    %v157 = vld [vmem:[#allocation5 + $0x58] sm:$0xff]
    %v158 = vld [vmem:[#allocation5 + $0x60] sm:$0xff]
    %v159 = vld [vmem:[#allocation5 + $0x68] sm:$0xff]
    %v160 = vld [vmem:[#allocation5 + $0x70] sm:$0xff]
    %v161 = vld [vmem:[#allocation5 + $0x78] sm:$0xff]
    %v162 = vld [vmem:[%s2] sm:$0x1]
    %v164 = vlaneseq
    %v165 = vshrl.u32 %v164, 7
    %v166 = vsub.s32 0, %v165
    %v167 = vrot.slane %v162, %v166
    %169 = vmatprep.subr.mxu0 0.0
    %170 = vmatpush1.msra.mxu0 %v146
    %171 = vmatprep.subr.mxu0 0.0
    %172 = vmatpush1.msra.mxu0 %v147
    %173 = vmatprep.subr.mxu0 0.0
    %174 = vmatpush1.msra.mxu0 %v148
    %175 = vmatprep.subr.mxu0 0.0
    %176 = vmatpush1.msra.mxu0 %v149
    %177 = vmatprep.subr.mxu0 0.0
    %178 = vmatpush1.msra.mxu0 %v150
    %179 = vmatprep.subr.mxu0 0.0
    %180 = vmatpush1.msra.mxu0 %v151
    %181 = vmatprep.subr.mxu0 0.0
    %182 = vmatpush1.msra.mxu0 %v152
    %183 = vmatprep.subr.mxu0 0.0
    %184 = vmatpush1.msra.mxu0 %v153
    %185 = vmatprep.subr.mxu0 0.0
    %186 = vmatpush1.msra.mxu0 %v154
    %187 = vmatprep.subr.mxu0 0.0
    %188 = vmatpush1.msra.mxu0 %v155
    %189 = vmatprep.subr.mxu0 0.0
    %190 = vmatpush1.msra.mxu0 %v156
    %191 = vmatprep.subr.mxu0 0.0
    %192 = vmatpush1.msra.mxu0 %v157
    %193 = vmatprep.subr.mxu0 0.0
    %194 = vmatpush1.msra.mxu0 %v158
    %195 = vmatprep.subr.mxu0 0.0
    %196 = vmatpush1.msra.mxu0 %v159
    %197 = vmatprep.subr.mxu0 0.0
    %198 = vmatpush1.msra.mxu0 %v160
    %199 = vmatprep.subr.mxu0 0.0
    %200 = vmatpush1.msra.mxu0 %v161
    %201 = vmatprep.subr.mxu0 0.0
    %202 = vmatpush1.msra.mxu0 0.0
    %203 = vmatprep.subr.mxu0 0.0
    %204 = vmatpush1.msra.mxu0 0.0
    %205 = vmatprep.subr.mxu0 0.0
    %206 = vmatpush1.msra.mxu0 0.0
    %207 = vmatprep.subr.mxu0 0.0
    %208 = vmatpush1.msra.mxu0 0.0
    %209 = vmatprep.subr.mxu0 0.0
    %210 = vmatpush1.msra.mxu0 0.0
    %211 = vmatprep.subr.mxu0 0.0
    %212 = vmatpush1.msra.mxu0 0.0
    %213 = vmatprep.subr.mxu0 0.0
    %214 = vmatpush1.msra.mxu0 0.0
    %215 = vmatprep.subr.mxu0 0.0
    %216 = vmatpush1.msra.mxu0 0.0
    %217 = vmatprep.subr.mxu0 0.0
    %218 = vmatpush1.msra.mxu0 0.0
    %219 = vmatprep.subr.mxu0 0.0
    %220 = vmatpush1.msra.mxu0 0.0
    %221 = vmatprep.subr.mxu0 0.0
    %222 = vmatpush1.msra.mxu0 0.0
    %223 = vmatprep.subr.mxu0 0.0
    %224 = vmatpush1.msra.mxu0 0.0
    %225 = vmatprep.subr.mxu0 0.0
    %226 = vmatpush1.msra.mxu0 0.0
    %227 = vmatprep.subr.mxu0 0.0
    %228 = vmatpush1.msra.mxu0 0.0
    %229 = vmatprep.subr.mxu0 0.0
    %230 = vmatpush1.msra.mxu0 0.0
    %231 = vmatprep.subr.mxu0 0.0
    %232 = vmatpush1.msra.mxu0 0.0
    %233 = vmatprep.mubr.f32.mxu0 0.0
    %234 = vmatmul.mubr.f32.gmra.mrb[0].mxu0 %v144
    %v235 = vpop.f32.mrb[0].mxu0
    %v236 = vadd.f32 %v167, %v235
    %v237 = vpop.f32.mrb[0].mxu0
    %238 = vmatprep.mubr.f32.mxu0 0.0
    %239 = vmatmul.mubr.f32.gmra.mrb[0].mxu0 %v145
    %v240 = vpop.f32.mrb[0].mxu0
    %v241 = vadd.f32 %v167, %v240
    %v242 = vpop.f32.mrb[0].mxu0
    %243 = vdwg.mxu0
    %v244 = vmax.f32 %v236, 0.0
    %v245 = vmax.f32 %v241, 0.0
    %v246 = vld [vmem:[#allocation7] sm:$0xff]
    %v247 = vld [vmem:[#allocation7 + $0x8] sm:$0xff]
    %v248 = vld [vmem:[#allocation7 + $0x10] sm:$0xff]
    %v249 = vld [vmem:[#allocation7 + $0x18] sm:$0xff]
    %v250 = vld [vmem:[#allocation7 + $0x20] sm:$0xff]
    %v251 = vld [vmem:[#allocation7 + $0x28] sm:$0xff]
    %v252 = vld [vmem:[#allocation7 + $0x30] sm:$0xff]
    %v253 = vld [vmem:[#allocation7 + $0x38] sm:$0xff]
    %v254 = vld [vmem:[#allocation7 + $0x40] sm:$0xff]
    %v255 = vld [vmem:[#allocation7 + $0x48] sm:$0xff]
    %v256 = vld [vmem:[#allocation7 + $0x50] sm:$0xff]
    %v257 = vld [vmem:[#allocation7 + $0x58] sm:$0xff]
    %v258 = vld [vmem:[#allocation7 + $0x60] sm:$0xff]
    %v259 = vld [vmem:[#allocation7 + $0x68] sm:$0xff]
    %v260 = vld [vmem:[#allocation7 + $0x70] sm:$0xff]
    %v261 = vld [vmem:[#allocation7 + $0x78] sm:$0xff]
    %v262 = vld [vmem:[%s4] sm:$0x1]
    %v264 = vlaneseq
    %v265 = vshrl.u32 %v264, 7
    %v266 = vsub.s32 0, %v265
    %v267 = vrot.slane %v262, %v266
    %269 = vmatprep.subr.mxu0 0.0
    %270 = vmatpush1.msra.mxu0 %v246
    %271 = vmatprep.subr.mxu0 0.0
    %272 = vmatpush1.msra.mxu0 %v247
    %273 = vmatprep.subr.mxu0 0.0
    %274 = vmatpush1.msra.mxu0 %v248
    %275 = vmatprep.subr.mxu0 0.0
    %276 = vmatpush1.msra.mxu0 %v249
    %277 = vmatprep.subr.mxu0 0.0
    %278 = vmatpush1.msra.mxu0 %v250
    %279 = vmatprep.subr.mxu0 0.0
    %280 = vmatpush1.msra.mxu0 %v251
    %281 = vmatprep.subr.mxu0 0.0
    %282 = vmatpush1.msra.mxu0 %v252
    %283 = vmatprep.subr.mxu0 0.0
    %284 = vmatpush1.msra.mxu0 %v253
    %285 = vmatprep.subr.mxu0 0.0
    %286 = vmatpush1.msra.mxu0 %v254
    %287 = vmatprep.subr.mxu0 0.0
    %288 = vmatpush1.msra.mxu0 %v255
    %289 = vmatprep.subr.mxu0 0.0
    %290 = vmatpush1.msra.mxu0 %v256
    %291 = vmatprep.subr.mxu0 0.0
    %292 = vmatpush1.msra.mxu0 %v257
    %293 = vmatprep.subr.mxu0 0.0
    %294 = vmatpush1.msra.mxu0 %v258
    %295 = vmatprep.subr.mxu0 0.0
    %296 = vmatpush1.msra.mxu0 %v259
    %297 = vmatprep.subr.mxu0 0.0
    %298 = vmatpush1.msra.mxu0 %v260
    %299 = vmatprep.subr.mxu0 0.0
    %300 = vmatpush1.msra.mxu0 %v261
    %301 = vmatprep.subr.mxu0 0.0
    %302 = vmatpush1.msra.mxu0 0.0
    %303 = vmatprep.subr.mxu0 0.0
    %304 = vmatpush1.msra.mxu0 0.0
    %305 = vmatprep.subr.mxu0 0.0
    %306 = vmatpush1.msra.mxu0 0.0
    %307 = vmatprep.subr.mxu0 0.0
    %308 = vmatpush1.msra.mxu0 0.0
    %309 = vmatprep.subr.mxu0 0.0
    %310 = vmatpush1.msra.mxu0 0.0
    %311 = vmatprep.subr.mxu0 0.0
    %312 = vmatpush1.msra.mxu0 0.0
    %313 = vmatprep.subr.mxu0 0.0
    %314 = vmatpush1.msra.mxu0 0.0
    %315 = vmatprep.subr.mxu0 0.0
    %316 = vmatpush1.msra.mxu0 0.0
    %317 = vmatprep.subr.mxu0 0.0
    %318 = vmatpush1.msra.mxu0 0.0
    %319 = vmatprep.subr.mxu0 0.0
    %320 = vmatpush1.msra.mxu0 0.0
    %321 = vmatprep.subr.mxu0 0.0
    %322 = vmatpush1.msra.mxu0 0.0
    %323 = vmatprep.subr.mxu0 0.0
    %324 = vmatpush1.msra.mxu0 0.0
    %325 = vmatprep.subr.mxu0 0.0
    %326 = vmatpush1.msra.mxu0 0.0
    %327 = vmatprep.subr.mxu0 0.0
    %328 = vmatpush1.msra.mxu0 0.0
    %329 = vmatprep.subr.mxu0 0.0
    %330 = vmatpush1.msra.mxu0 0.0
    %331 = vmatprep.subr.mxu0 0.0
    %332 = vmatpush1.msra.mxu0 0.0
    %333 = vmatprep.mubr.f32.mxu0 0.0
    %334 = vmatmul.mubr.f32.gmra.mrb[0].mxu0 %v244
    %v335 = vpop.f32.mrb[0].mxu0
    %v336 = vadd.f32 %v267, %v335
    %v337 = vpop.f32.mrb[0].mxu0
    %338 = vmatprep.mubr.f32.mxu0 0.0
    %339 = vmatmul.mubr.f32.gmra.mrb[0].mxu0 %v245
    %v340 = vpop.f32.mrb[0].mxu0
    %v341 = vadd.f32 %v267, %v340
    %v342 = vpop.f32.mrb[0].mxu0
    %343 = vdwg.mxu0
    %v344 = vmax.f32 %v336, 0.0
    %v345 = vmax.f32 %v341, 0.0
    %v346 = vld [vmem:[#allocation8] sm:$0xff]
    %v347 = vld [vmem:[#allocation8 + $0x8] sm:$0xff]
    %v348 = vld [vmem:[#allocation8 + $0x10] sm:$0xff]
    %v349 = vld [vmem:[#allocation8 + $0x18] sm:$0xff]
    %v350 = vld [vmem:[#allocation8 + $0x20] sm:$0xff]
    %v351 = vld [vmem:[#allocation8 + $0x28] sm:$0xff]
    %v352 = vld [vmem:[#allocation8 + $0x30] sm:$0xff]
    %v353 = vld [vmem:[#allocation8 + $0x38] sm:$0xff]
    %v354 = vld [vmem:[#allocation8 + $0x40] sm:$0xff]
    %v355 = vld [vmem:[#allocation8 + $0x48] sm:$0xff]
    %v356 = vld [vmem:[#allocation8 + $0x50] sm:$0xff]
    %v357 = vld [vmem:[#allocation8 + $0x58] sm:$0xff]
    %v358 = vld [vmem:[#allocation8 + $0x60] sm:$0xff]
    %v359 = vld [vmem:[#allocation8 + $0x68] sm:$0xff]
    %v360 = vld [vmem:[#allocation8 + $0x70] sm:$0xff]
    %v361 = vld [vmem:[#allocation8 + $0x78] sm:$0xff]
    %v362 = vld [vmem:[%s6] sm:$0x1]
    %v364 = vlaneseq
    %v365 = vshrl.u32 %v364, 7
    %v366 = vsub.s32 0, %v365
    %v367 = vrot.slane %v362, %v366
    %369 = vmatprep.subr.mxu0 0.0
    %370 = vmatpush1.msra.mxu0 %v346
    %371 = vmatprep.subr.mxu0 0.0
    %372 = vmatpush1.msra.mxu0 %v347
    %373 = vmatprep.subr.mxu0 0.0
    %374 = vmatpush1.msra.mxu0 %v348
    %375 = vmatprep.subr.mxu0 0.0
    %376 = vmatpush1.msra.mxu0 %v349
    %377 = vmatprep.subr.mxu0 0.0
    %378 = vmatpush1.msra.mxu0 %v350
    %379 = vmatprep.subr.mxu0 0.0
    %380 = vmatpush1.msra.mxu0 %v351
    %381 = vmatprep.subr.mxu0 0.0
    %382 = vmatpush1.msra.mxu0 %v352
    %383 = vmatprep.subr.mxu0 0.0
    %384 = vmatpush1.msra.mxu0 %v353
    %385 = vmatprep.subr.mxu0 0.0
    %386 = vmatpush1.msra.mxu0 %v354
    %387 = vmatprep.subr.mxu0 0.0
    %388 = vmatpush1.msra.mxu0 %v355
    %389 = vmatprep.subr.mxu0 0.0
    %390 = vmatpush1.msra.mxu0 %v356
    %391 = vmatprep.subr.mxu0 0.0
    %392 = vmatpush1.msra.mxu0 %v357
    %393 = vmatprep.subr.mxu0 0.0
    %394 = vmatpush1.msra.mxu0 %v358
    %395 = vmatprep.subr.mxu0 0.0
    %396 = vmatpush1.msra.mxu0 %v359
    %397 = vmatprep.subr.mxu0 0.0
    %398 = vmatpush1.msra.mxu0 %v360
    %399 = vmatprep.subr.mxu0 0.0
    %400 = vmatpush1.msra.mxu0 %v361
    %401 = vmatprep.subr.mxu0 0.0
    %402 = vmatpush1.msra.mxu0 0.0
    %403 = vmatprep.subr.mxu0 0.0
    %404 = vmatpush1.msra.mxu0 0.0
    %405 = vmatprep.subr.mxu0 0.0
    %406 = vmatpush1.msra.mxu0 0.0
    %407 = vmatprep.subr.mxu0 0.0
    %408 = vmatpush1.msra.mxu0 0.0
    %409 = vmatprep.subr.mxu0 0.0
    %410 = vmatpush1.msra.mxu0 0.0
    %411 = vmatprep.subr.mxu0 0.0
    %412 = vmatpush1.msra.mxu0 0.0
    %413 = vmatprep.subr.mxu0 0.0
    %414 = vmatpush1.msra.mxu0 0.0
    %415 = vmatprep.subr.mxu0 0.0
    %416 = vmatpush1.msra.mxu0 0.0
    %417 = vmatprep.subr.mxu0 0.0
    %418 = vmatpush1.msra.mxu0 0.0
    %419 = vmatprep.subr.mxu0 0.0
    %420 = vmatpush1.msra.mxu0 0.0
    %421 = vmatprep.subr.mxu0 0.0
    %422 = vmatpush1.msra.mxu0 0.0
    %423 = vmatprep.subr.mxu0 0.0
    %424 = vmatpush1.msra.mxu0 0.0
    %425 = vmatprep.subr.mxu0 0.0
    %426 = vmatpush1.msra.mxu0 0.0
    %427 = vmatprep.subr.mxu0 0.0
    %428 = vmatpush1.msra.mxu0 0.0
    %429 = vmatprep.subr.mxu0 0.0
    %430 = vmatpush1.msra.mxu0 0.0
    %431 = vmatprep.subr.mxu0 0.0
    %432 = vmatpush1.msra.mxu0 0.0
    %433 = vmatprep.mubr.f32.mxu0 0.0
    %434 = vmatmul.mubr.f32.gmra.mrb[0].mxu0 %v344
    %v435 = vpop.f32.mrb[0].mxu0
    %v436 = vadd.f32 %v367, %v435
    %v437 = vpop.f32.mrb[0].mxu0
    %438 = vmatprep.mubr.f32.mxu0 0.0
    %439 = vmatmul.mubr.f32.gmra.mrb[0].mxu0 %v345
    %v440 = vpop.f32.mrb[0].mxu0
    %v441 = vadd.f32 %v367, %v440
    %v442 = vpop.f32.mrb[0].mxu0
    %443 = vdwg.mxu0
    %v444 = vmax.f32 %v436, 0.0
    %v445 = vmax.f32 %v441, 0.0
    %v446 = vld [vmem:[#allocation10] sm:$0xff]
    %v447 = vld [vmem:[#allocation10 + $0x8] sm:$0xff]
    %v448 = vld [vmem:[#allocation10 + $0x10] sm:$0xff]
    %v449 = vld [vmem:[#allocation10 + $0x18] sm:$0xff]
    %v450 = vld [vmem:[#allocation10 + $0x20] sm:$0xff]
    %v451 = vld [vmem:[#allocation10 + $0x28] sm:$0xff]
    %v452 = vld [vmem:[#allocation10 + $0x30] sm:$0xff]
    %v453 = vld [vmem:[#allocation10 + $0x38] sm:$0xff]
    %v454 = vld [vmem:[#allocation10 + $0x40] sm:$0xff]
    %v455 = vld [vmem:[#allocation10 + $0x48] sm:$0xff]
    %v456 = vld [vmem:[#allocation10 + $0x50] sm:$0xff]
    %v457 = vld [vmem:[#allocation10 + $0x58] sm:$0xff]
    %v458 = vld [vmem:[#allocation10 + $0x60] sm:$0xff]
    %v459 = vld [vmem:[#allocation10 + $0x68] sm:$0xff]
    %v460 = vld [vmem:[#allocation10 + $0x70] sm:$0xff]
    %v461 = vld [vmem:[#allocation10 + $0x78] sm:$0xff]
    %v462 = vld [vmem:[%s8] sm:$0x1]
    %v464 = vlaneseq
    %v465 = vshrl.u32 %v464, 7
    %v466 = vsub.s32 0, %v465
    %v467 = vrot.slane %v462, %v466
    %469 = vmatprep.subr.mxu0 0.0
    %470 = vmatpush1.msra.mxu0 %v446
    %471 = vmatprep.subr.mxu0 0.0
    %472 = vmatpush1.msra.mxu0 %v447
    %473 = vmatprep.subr.mxu0 0.0
    %474 = vmatpush1.msra.mxu0 %v448
    %475 = vmatprep.subr.mxu0 0.0
    %476 = vmatpush1.msra.mxu0 %v449
    %477 = vmatprep.subr.mxu0 0.0
    %478 = vmatpush1.msra.mxu0 %v450
    %479 = vmatprep.subr.mxu0 0.0
    %480 = vmatpush1.msra.mxu0 %v451
    %481 = vmatprep.subr.mxu0 0.0
    %482 = vmatpush1.msra.mxu0 %v452
    %483 = vmatprep.subr.mxu0 0.0
    %484 = vmatpush1.msra.mxu0 %v453
    %485 = vmatprep.subr.mxu0 0.0
    %486 = vmatpush1.msra.mxu0 %v454
    %487 = vmatprep.subr.mxu0 0.0
    %488 = vmatpush1.msra.mxu0 %v455
    %489 = vmatprep.subr.mxu0 0.0
    %490 = vmatpush1.msra.mxu0 %v456
    %491 = vmatprep.subr.mxu0 0.0
    %492 = vmatpush1.msra.mxu0 %v457
    %493 = vmatprep.subr.mxu0 0.0
    %494 = vmatpush1.msra.mxu0 %v458
    %495 = vmatprep.subr.mxu0 0.0
    %496 = vmatpush1.msra.mxu0 %v459
    %497 = vmatprep.subr.mxu0 0.0
    %498 = vmatpush1.msra.mxu0 %v460
    %499 = vmatprep.subr.mxu0 0.0
    %500 = vmatpush1.msra.mxu0 %v461
    %501 = vmatprep.subr.mxu0 0.0
    %502 = vmatpush1.msra.mxu0 0.0
    %503 = vmatprep.subr.mxu0 0.0
    %504 = vmatpush1.msra.mxu0 0.0
    %505 = vmatprep.subr.mxu0 0.0
    %506 = vmatpush1.msra.mxu0 0.0
    %507 = vmatprep.subr.mxu0 0.0
    %508 = vmatpush1.msra.mxu0 0.0
    %509 = vmatprep.subr.mxu0 0.0
    %510 = vmatpush1.msra.mxu0 0.0
    %511 = vmatprep.subr.mxu0 0.0
    %512 = vmatpush1.msra.mxu0 0.0
    %513 = vmatprep.subr.mxu0 0.0
    %514 = vmatpush1.msra.mxu0 0.0
    %515 = vmatprep.subr.mxu0 0.0
    %516 = vmatpush1.msra.mxu0 0.0
    %517 = vmatprep.subr.mxu0 0.0
    %518 = vmatpush1.msra.mxu0 0.0
    %519 = vmatprep.subr.mxu0 0.0
    %520 = vmatpush1.msra.mxu0 0.0
    %521 = vmatprep.subr.mxu0 0.0
    %522 = vmatpush1.msra.mxu0 0.0
    %523 = vmatprep.subr.mxu0 0.0
    %524 = vmatpush1.msra.mxu0 0.0
    %525 = vmatprep.subr.mxu0 0.0
    %526 = vmatpush1.msra.mxu0 0.0
    %527 = vmatprep.subr.mxu0 0.0
    %528 = vmatpush1.msra.mxu0 0.0
    %529 = vmatprep.subr.mxu0 0.0
    %530 = vmatpush1.msra.mxu0 0.0
    %531 = vmatprep.subr.mxu0 0.0
    %532 = vmatpush1.msra.mxu0 0.0
    %533 = vmatprep.mubr.f32.mxu0 0.0
    %534 = vmatmul.mubr.f32.gmra.mrb[0].mxu0 %v444
    %v535 = vpop.f32.mrb[0].mxu0
    %v536 = vadd.f32 %v467, %v535
    %v537 = vpop.f32.mrb[0].mxu0
    %538 = vmatprep.mubr.f32.mxu0 0.0
    %539 = vmatmul.mubr.f32.gmra.mrb[0].mxu0 %v445
    %v540 = vpop.f32.mrb[0].mxu0
    %v541 = vadd.f32 %v467, %v540
    %v542 = vpop.f32.mrb[0].mxu0
    %543 = vdwg.mxu0
    %v544 = vmax.f32 %v536, 0.0
    %v545 = vmax.f32 %v541, 0.0
    %v546 = vld [vmem:[#allocation11] sm:$0xff]
    %v547 = vld [vmem:[#allocation11 + $0x8] sm:$0xff]
    %v548 = vld [vmem:[#allocation11 + $0x10] sm:$0xff]
    %v549 = vld [vmem:[#allocation11 + $0x18] sm:$0xff]
    %v550 = vld [vmem:[#allocation11 + $0x20] sm:$0xff]
    %v551 = vld [vmem:[#allocation11 + $0x28] sm:$0xff]
    %v552 = vld [vmem:[#allocation11 + $0x30] sm:$0xff]
    %v553 = vld [vmem:[#allocation11 + $0x38] sm:$0xff]
    %v554 = vld [vmem:[#allocation11 + $0x40] sm:$0xff]
    %v555 = vld [vmem:[#allocation11 + $0x48] sm:$0xff]
    %v556 = vld [vmem:[#allocation11 + $0x50] sm:$0xff]
    %v557 = vld [vmem:[#allocation11 + $0x58] sm:$0xff]
    %v558 = vld [vmem:[#allocation11 + $0x60] sm:$0xff]
    %v559 = vld [vmem:[#allocation11 + $0x68] sm:$0xff]
    %v560 = vld [vmem:[#allocation11 + $0x70] sm:$0xff]
    %v561 = vld [vmem:[#allocation11 + $0x78] sm:$0xff]
    %v562 = vld [vmem:[%s10] sm:$0x1]
    %v564 = vlaneseq
    %v565 = vshrl.u32 %v564, 7
    %v566 = vsub.s32 0, %v565
    %v567 = vrot.slane %v562, %v566
    %569 = vmatprep.subr.mxu0 0.0
    %570 = vmatpush1.msra.mxu0 %v546
    %571 = vmatprep.subr.mxu0 0.0
    %572 = vmatpush1.msra.mxu0 %v547
    %573 = vmatprep.subr.mxu0 0.0
    %574 = vmatpush1.msra.mxu0 %v548
    %575 = vmatprep.subr.mxu0 0.0
    %576 = vmatpush1.msra.mxu0 %v549
    %577 = vmatprep.subr.mxu0 0.0
    %578 = vmatpush1.msra.mxu0 %v550
    %579 = vmatprep.subr.mxu0 0.0
    %580 = vmatpush1.msra.mxu0 %v551
    %581 = vmatprep.subr.mxu0 0.0
    %582 = vmatpush1.msra.mxu0 %v552
    %583 = vmatprep.subr.mxu0 0.0
    %584 = vmatpush1.msra.mxu0 %v553
    %585 = vmatprep.subr.mxu0 0.0
    %586 = vmatpush1.msra.mxu0 %v554
    %587 = vmatprep.subr.mxu0 0.0
    %588 = vmatpush1.msra.mxu0 %v555
    %589 = vmatprep.subr.mxu0 0.0
    %590 = vmatpush1.msra.mxu0 %v556
    %591 = vmatprep.subr.mxu0 0.0
    %592 = vmatpush1.msra.mxu0 %v557
    %593 = vmatprep.subr.mxu0 0.0
    %594 = vmatpush1.msra.mxu0 %v558
    %595 = vmatprep.subr.mxu0 0.0
    %596 = vmatpush1.msra.mxu0 %v559
    %597 = vmatprep.subr.mxu0 0.0
    %598 = vmatpush1.msra.mxu0 %v560
    %599 = vmatprep.subr.mxu0 0.0
    %600 = vmatpush1.msra.mxu0 %v561
    %601 = vmatprep.subr.mxu0 0.0
    %602 = vmatpush1.msra.mxu0 0.0
    %603 = vmatprep.subr.mxu0 0.0
    %604 = vmatpush1.msra.mxu0 0.0
    %605 = vmatprep.subr.mxu0 0.0
    %606 = vmatpush1.msra.mxu0 0.0
    %607 = vmatprep.subr.mxu0 0.0
    %608 = vmatpush1.msra.mxu0 0.0
    %609 = vmatprep.subr.mxu0 0.0
    %610 = vmatpush1.msra.mxu0 0.0
    %611 = vmatprep.subr.mxu0 0.0
    %612 = vmatpush1.msra.mxu0 0.0
    %613 = vmatprep.subr.mxu0 0.0
    %614 = vmatpush1.msra.mxu0 0.0
    %615 = vmatprep.subr.mxu0 0.0
    %616 = vmatpush1.msra.mxu0 0.0
    %617 = vmatprep.subr.mxu0 0.0
    %618 = vmatpush1.msra.mxu0 0.0
    %619 = vmatprep.subr.mxu0 0.0
    %620 = vmatpush1.msra.mxu0 0.0
    %621 = vmatprep.subr.mxu0 0.0
    %622 = vmatpush1.msra.mxu0 0.0
    %623 = vmatprep.subr.mxu0 0.0
    %624 = vmatpush1.msra.mxu0 0.0
    %625 = vmatprep.subr.mxu0 0.0
    %626 = vmatpush1.msra.mxu0 0.0
    %627 = vmatprep.subr.mxu0 0.0
    %628 = vmatpush1.msra.mxu0 0.0
    %629 = vmatprep.subr.mxu0 0.0
    %630 = vmatpush1.msra.mxu0 0.0
    %631 = vmatprep.subr.mxu0 0.0
    %632 = vmatpush1.msra.mxu0 0.0
    %633 = vmatprep.mubr.f32.mxu0 0.0
    %634 = vmatmul.mubr.f32.gmra.mrb[0].mxu0 %v544
    %v635 = vpop.f32.mrb[0].mxu0
    %v636 = vadd.f32 %v567, %v635
    %v637 = vpop.f32.mrb[0].mxu0
    %638 = vmatprep.mubr.f32.mxu0 0.0
    %639 = vmatmul.mubr.f32.gmra.mrb[0].mxu0 %v545
    %v640 = vpop.f32.mrb[0].mxu0
    %v641 = vadd.f32 %v567, %v640
    %v642 = vpop.f32.mrb[0].mxu0
    %643 = vdwg.mxu0
    %v644 = vmax.f32 %v636, 0.0
    %v645 = vmax.f32 %v641, 0.0
    %v646 = vld [vmem:[#allocation13] sm:$0xff]
    %v647 = vld [vmem:[#allocation13 + $0x8] sm:$0xff]
    %v648 = vld [vmem:[#allocation13 + $0x10] sm:$0xff]
    %v649 = vld [vmem:[#allocation13 + $0x18] sm:$0xff]
    %v650 = vld [vmem:[#allocation13 + $0x20] sm:$0xff]
    %v651 = vld [vmem:[#allocation13 + $0x28] sm:$0xff]
    %v652 = vld [vmem:[#allocation13 + $0x30] sm:$0xff]
    %v653 = vld [vmem:[#allocation13 + $0x38] sm:$0xff]
    %v654 = vld [vmem:[#allocation13 + $0x40] sm:$0xff]
    %v655 = vld [vmem:[#allocation13 + $0x48] sm:$0xff]
    %v656 = vld [vmem:[#allocation13 + $0x50] sm:$0xff]
    %v657 = vld [vmem:[#allocation13 + $0x58] sm:$0xff]
    %v658 = vld [vmem:[#allocation13 + $0x60] sm:$0xff]
    %v659 = vld [vmem:[#allocation13 + $0x68] sm:$0xff]
    %v660 = vld [vmem:[#allocation13 + $0x70] sm:$0xff]
    %v661 = vld [vmem:[#allocation13 + $0x78] sm:$0xff]
    %v662 = vld [vmem:[#allocation13 + $0x80] sm:$0xff]
    %v663 = vld [vmem:[#allocation13 + $0x88] sm:$0xff]
    %v664 = vld [vmem:[#allocation13 + $0x90] sm:$0xff]
    %v665 = vld [vmem:[#allocation13 + $0x98] sm:$0xff]
    %v666 = vld [vmem:[#allocation13 + $0xa0] sm:$0xff]
    %v667 = vld [vmem:[#allocation13 + $0xa8] sm:$0xff]
    %v668 = vld [vmem:[#allocation13 + $0xb0] sm:$0xff]
    %v669 = vld [vmem:[#allocation13 + $0xb8] sm:$0xff]
    %v670 = vld [vmem:[#allocation13 + $0xc0] sm:$0xff]
    %v671 = vld [vmem:[#allocation13 + $0xc8] sm:$0xff]
    %v672 = vld [vmem:[#allocation13 + $0xd0] sm:$0xff]
    %v673 = vld [vmem:[#allocation13 + $0xd8] sm:$0xff]
    %v674 = vld [vmem:[#allocation13 + $0xe0] sm:$0xff]
    %v675 = vld [vmem:[#allocation13 + $0xe8] sm:$0xff]
    %v676 = vld [vmem:[#allocation13 + $0xf0] sm:$0xff]
    %v677 = vld [vmem:[#allocation13 + $0xf8] sm:$0xff]
    %v678 = vld [vmem:[#allocation13 + $0x100] sm:$0xff]
    %v679 = vld [vmem:[#allocation13 + $0x108] sm:$0xff]
    %v680 = vld [vmem:[#allocation13 + $0x110] sm:$0xff]
    %v681 = vld [vmem:[#allocation13 + $0x118] sm:$0xff]
    %v682 = vld [vmem:[#allocation13 + $0x120] sm:$0xff]
    %v683 = vld [vmem:[#allocation13 + $0x128] sm:$0xff]
    %v684 = vld [vmem:[#allocation13 + $0x130] sm:$0xff]
    %v685 = vld [vmem:[#allocation13 + $0x138] sm:$0xff]
    %v686 = vld [vmem:[#allocation13 + $0x140] sm:$0xff]
    %v687 = vld [vmem:[#allocation13 + $0x148] sm:$0xff]
    %v688 = vld [vmem:[#allocation13 + $0x150] sm:$0xff]
    %v689 = vld [vmem:[#allocation13 + $0x158] sm:$0xff]
    %v690 = vld [vmem:[#allocation13 + $0x160] sm:$0xff]
    %v691 = vld [vmem:[#allocation13 + $0x168] sm:$0xff]
    %v692 = vld [vmem:[#allocation13 + $0x170] sm:$0xff]
    %v693 = vld [vmem:[#allocation13 + $0x178] sm:$0xff]
    %v694 = vld [vmem:[%s12] sm:$0x7]
    %v696 = vlaneseq
    %v697 = vshrl.u32 %v696, 7
    %v698 = vsub.s32 0, %v697
    %v699 = vrot.slane %v694, %v698
    %v700 = vlaneseq
    %v701 = vshrl.u32 %v700, 7
    %v702 = vsub.s32 1, %v701
    %v703 = vrot.slane %v694, %v702
    %v704 = vlaneseq
    %v705 = vshrl.u32 %v704, 7
    %v706 = vsub.s32 2, %v705
    %v707 = vrot.slane %v694, %v706
    %711 = vmatprep.subr.mxu0 %v647
    %712 = vmatpush1.msra.mxu0 %v646
    %713 = vmatprep.subr.mxu0 %v650
    %714 = vmatpush1.msra.mxu0 %v649
    %715 = vmatprep.subr.mxu0 %v653
    %716 = vmatpush1.msra.mxu0 %v652
    %717 = vmatprep.subr.mxu0 %v656
    %718 = vmatpush1.msra.mxu0 %v655
    %719 = vmatprep.subr.mxu0 %v659
    %720 = vmatpush1.msra.mxu0 %v658
    %721 = vmatprep.subr.mxu0 %v662
    %722 = vmatpush1.msra.mxu0 %v661
    %723 = vmatprep.subr.mxu0 %v665
    %724 = vmatpush1.msra.mxu0 %v664
    %725 = vmatprep.subr.mxu0 %v668
    %726 = vmatpush1.msra.mxu0 %v667
    %727 = vmatprep.subr.mxu0 %v671
    %728 = vmatpush1.msra.mxu0 %v670
    %729 = vmatprep.subr.mxu0 %v674
    %730 = vmatpush1.msra.mxu0 %v673
    %731 = vmatprep.subr.mxu0 %v677
    %732 = vmatpush1.msra.mxu0 %v676
    %733 = vmatprep.subr.mxu0 %v680
    %734 = vmatpush1.msra.mxu0 %v679
    %735 = vmatprep.subr.mxu0 %v683
    %736 = vmatpush1.msra.mxu0 %v682
    %737 = vmatprep.subr.mxu0 %v686
    %738 = vmatpush1.msra.mxu0 %v685
    %739 = vmatprep.subr.mxu0 %v689
    %740 = vmatpush1.msra.mxu0 %v688
    %741 = vmatprep.subr.mxu0 %v692
    %742 = vmatpush1.msra.mxu0 %v691
    %743 = vmatprep.subr.mxu0 0.0
    %744 = vmatpush1.msra.mxu0 0.0
    %745 = vmatprep.subr.mxu0 0.0
    %746 = vmatpush1.msra.mxu0 0.0
    %747 = vmatprep.subr.mxu0 0.0
    %748 = vmatpush1.msra.mxu0 0.0
    %749 = vmatprep.subr.mxu0 0.0
    %750 = vmatpush1.msra.mxu0 0.0
    %751 = vmatprep.subr.mxu0 0.0
    %752 = vmatpush1.msra.mxu0 0.0
    %753 = vmatprep.subr.mxu0 0.0
    %754 = vmatpush1.msra.mxu0 0.0
    %755 = vmatprep.subr.mxu0 0.0
    %756 = vmatpush1.msra.mxu0 0.0
    %757 = vmatprep.subr.mxu0 0.0
    %758 = vmatpush1.msra.mxu0 0.0
    %759 = vmatprep.subr.mxu0 0.0
    %760 = vmatpush1.msra.mxu0 0.0
    %761 = vmatprep.subr.mxu0 0.0
    %762 = vmatpush1.msra.mxu0 0.0
    %763 = vmatprep.subr.mxu0 0.0
    %764 = vmatpush1.msra.mxu0 0.0
    %765 = vmatprep.subr.mxu0 0.0
    %766 = vmatpush1.msra.mxu0 0.0
    %767 = vmatprep.subr.mxu0 0.0
    %768 = vmatpush1.msra.mxu0 0.0
    %769 = vmatprep.subr.mxu0 0.0
    %770 = vmatpush1.msra.mxu0 0.0
    %771 = vmatprep.subr.mxu0 0.0
    %772 = vmatpush1.msra.mxu0 0.0
    %773 = vmatprep.subr.mxu0 0.0
    %774 = vmatpush1.msra.mxu0 0.0
    %775 = vmatprep.mubr.f32.mxu0 0.0
    %776 = vmatmul.mubr.f32.gmra.mrb[0].mxu0 %v644
    %v777 = vpop.f32.mrb[0].mxu0
    %v778 = vadd.f32 %v699, %v777
    %v779 = vpop.f32.mrb[0].mxu0
    %v780 = vadd.f32 %v703, %v779
    %781 = vmatprep.mubr.f32.mxu0 0.0
    %782 = vmatmul.mubr.f32.gmra.mrb[0].mxu0 %v645
    %v783 = vpop.f32.mrb[0].mxu0
    %v784 = vadd.f32 %v699, %v783
    %v785 = vpop.f32.mrb[0].mxu0
    %v786 = vadd.f32 %v703, %v785
    %787 = vdwg.mxu0
    %788 = vmatprep.subr.mxu0 0.0
    %789 = vmatpush1.msra.mxu0 %v648
    %790 = vmatprep.subr.mxu0 0.0
    %791 = vmatpush1.msra.mxu0 %v651
    %792 = vmatprep.subr.mxu0 0.0
    %793 = vmatpush1.msra.mxu0 %v654
    %794 = vmatprep.subr.mxu0 0.0
    %795 = vmatpush1.msra.mxu0 %v657
    %796 = vmatprep.subr.mxu0 0.0
    %797 = vmatpush1.msra.mxu0 %v660
    %798 = vmatprep.subr.mxu0 0.0
    %799 = vmatpush1.msra.mxu0 %v663
    %800 = vmatprep.subr.mxu0 0.0
    %801 = vmatpush1.msra.mxu0 %v666
    %802 = vmatprep.subr.mxu0 0.0
    %803 = vmatpush1.msra.mxu0 %v669
    %804 = vmatprep.subr.mxu0 0.0
    %805 = vmatpush1.msra.mxu0 %v672
    %806 = vmatprep.subr.mxu0 0.0
    %807 = vmatpush1.msra.mxu0 %v675
    %808 = vmatprep.subr.mxu0 0.0
    %809 = vmatpush1.msra.mxu0 %v678
    %810 = vmatprep.subr.mxu0 0.0
    %811 = vmatpush1.msra.mxu0 %v681
    %812 = vmatprep.subr.mxu0 0.0
    %813 = vmatpush1.msra.mxu0 %v684
    %814 = vmatprep.subr.mxu0 0.0
    %815 = vmatpush1.msra.mxu0 %v687
    %816 = vmatprep.subr.mxu0 0.0
    %817 = vmatpush1.msra.mxu0 %v690
    %818 = vmatprep.subr.mxu0 0.0
    %819 = vmatpush1.msra.mxu0 %v693
    %820 = vmatprep.subr.mxu0 0.0
    %821 = vmatpush1.msra.mxu0 0.0
    %822 = vmatprep.subr.mxu0 0.0
    %823 = vmatpush1.msra.mxu0 0.0
    %824 = vmatprep.subr.mxu0 0.0
    %825 = vmatpush1.msra.mxu0 0.0
    %826 = vmatprep.subr.mxu0 0.0
    %827 = vmatpush1.msra.mxu0 0.0
    %828 = vmatprep.subr.mxu0 0.0
    %829 = vmatpush1.msra.mxu0 0.0
    %830 = vmatprep.subr.mxu0 0.0
    %831 = vmatpush1.msra.mxu0 0.0
    %832 = vmatprep.subr.mxu0 0.0
    %833 = vmatpush1.msra.mxu0 0.0
    %834 = vmatprep.subr.mxu0 0.0
    %835 = vmatpush1.msra.mxu0 0.0
    %836 = vmatprep.subr.mxu0 0.0
    %837 = vmatpush1.msra.mxu0 0.0
    %838 = vmatprep.subr.mxu0 0.0
    %839 = vmatpush1.msra.mxu0 0.0
    %840 = vmatprep.subr.mxu0 0.0
    %841 = vmatpush1.msra.mxu0 0.0
    %842 = vmatprep.subr.mxu0 0.0
    %843 = vmatpush1.msra.mxu0 0.0
    %844 = vmatprep.subr.mxu0 0.0
    %845 = vmatpush1.msra.mxu0 0.0
    %846 = vmatprep.subr.mxu0 0.0
    %847 = vmatpush1.msra.mxu0 0.0
    %848 = vmatprep.subr.mxu0 0.0
    %849 = vmatpush1.msra.mxu0 0.0
    %850 = vmatprep.subr.mxu0 0.0
    %851 = vmatpush1.msra.mxu0 0.0
    %852 = vmatprep.mubr.f32.mxu0 0.0
    %853 = vmatmul.mubr.f32.gmra.mrb[0].mxu0 %v644
    %v854 = vpop.f32.mrb[0].mxu0
    %v855 = vadd.f32 %v707, %v854
    %v856 = vpop.f32.mrb[0].mxu0
    %857 = vmatprep.mubr.f32.mxu0 0.0
    %858 = vmatmul.mubr.f32.gmra.mrb[0].mxu0 %v645
    %v859 = vpop.f32.mrb[0].mxu0
    %v860 = vadd.f32 %v707, %v859
    %v861 = vpop.f32.mrb[0].mxu0
    %862 = vdwg.mxu0
    %v863 = vmax.f32 %v778, 0.0
    %v864 = vmax.f32 %v784, 0.0
    %v865 = vand.u32 2147483647, %v778
    %v866 = vand.u32 2147483647, %v784
    %v867 = vsub.f32 0.0, %v865
    %v868 = vsub.f32 0.0, %v866
    %v869 = vmul.f32 %v867, 1.442695
    %v870 = vpow.pop %v869
    %v871 = vmul.f32 %v868, 1.442695
    %v872 = vpow.pop %v871
    %v873 = vadd.f32 %v870, 1.0
    %v874 = vlog2.pop %v873
    %v875 = vmul.f32 %v874, 0.6931472
    %v876 = vmul.f32 -0.5, %v870
    %v877 = vadd.f32 %v876, 1.0
    %v878 = vmul.f32 %v877, %v870
    %v879 = vand.u32 2147483647, %v870
    %vm880 = vcmp.lt.f32.partialorder %v879, 0.0004427343
    %v881 = vsel %vm880, %v878, %v875
    %v882 = vadd.f32 %v872, 1.0
    %v883 = vlog2.pop %v882
    %v884 = vmul.f32 %v883, 0.6931472
    %v885 = vmul.f32 -0.5, %v872
    %v886 = vadd.f32 %v885, 1.0
    %v887 = vmul.f32 %v886, %v872
    %v888 = vand.u32 2147483647, %v872
    %vm889 = vcmp.lt.f32.partialorder %v888, 0.0004427343
    %v890 = vsel %vm889, %v887, %v884
    %v891 = vadd.f32 %v863, %v881
    %v892 = vadd.f32 %v864, %v890
    %v893 = vadd.f32 %v891, 1e-06
    %v894 = vadd.f32 %v892, 1e-06
    %895 = vst [vmem:[#allocation14] sm:$0xff] %v893
    %896 = vst [vmem:[#allocation14 + $0x8] sm:$0xff] %v894
    %v897 = vmax.f32 %v780, 0.0
    %v898 = vmax.f32 %v786, 0.0
    %v899 = vand.u32 2147483647, %v780
    %v900 = vand.u32 2147483647, %v786
    %v901 = vsub.f32 0.0, %v899
    %v902 = vsub.f32 0.0, %v900
    %v903 = vmul.f32 %v901, 1.442695
    %v904 = vpow.pop %v903
    %v905 = vmul.f32 %v902, 1.442695
    %v906 = vpow.pop %v905
    %v907 = vadd.f32 %v904, 1.0
    %v908 = vlog2.pop %v907
    %v909 = vmul.f32 %v908, 0.6931472
    %v910 = vmul.f32 -0.5, %v904
    %v911 = vadd.f32 %v910, 1.0
    %v912 = vmul.f32 %v911, %v904
    %v913 = vand.u32 2147483647, %v904
    %vm914 = vcmp.lt.f32.partialorder %v913, 0.0004427343
    %v915 = vsel %vm914, %v912, %v909
    %v916 = vadd.f32 %v906, 1.0
    %v917 = vlog2.pop %v916
    %v918 = vmul.f32 %v917, 0.6931472
    %v919 = vmul.f32 -0.5, %v906
    %v920 = vadd.f32 %v919, 1.0
    %v921 = vmul.f32 %v920, %v906
    %v922 = vand.u32 2147483647, %v906
    %vm923 = vcmp.lt.f32.partialorder %v922, 0.0004427343
    %v924 = vsel %vm923, %v921, %v918
    %v925 = vadd.f32 %v897, %v915
    %v926 = vadd.f32 %v898, %v924
    %v927 = vadd.f32 %v925, 1e-06
    %v928 = vadd.f32 %v926, 1e-06
    %929 = vst [vmem:[#allocation15] sm:$0xff] %v927
    %930 = vst [vmem:[#allocation15 + $0x8] sm:$0xff] %v928
    %v931 = vmul.f32 %v855, 0.5
    %v932 = vmul.f32 %v860, 0.5
    %v933 = vtanh.pop %v931
    %v934 = vtanh.pop %v932
    %v935 = vadd.f32 %v933, 1.0
    %v936 = vadd.f32 %v934, 1.0
    %v937 = vmul.f32 %v935, 0.5
    %v938 = vmul.f32 %v936, 0.5
    %939 = vst [vmem:[#allocation17] sm:$0xff] %v937
    %940 = vst [vmem:[#allocation17 + $0x8] sm:$0xff] %v938
    // Predicated region
    $region82: #{tpu_custom_call.1} parent=1 // pred_check
      _
    $region83: #{tpu_custom_call.1} parent=1 // pred_check_branch
      %942 = sbr.rel (0) target = $region85
    $region84: #{tpu_custom_call.1} parent=1 // pred_region
      %s944 = ssub.s32 256, 256
      %945 = vsyncadd [#allocation4], %s944
      %s946 = sshll.u32 [#allocation14], 4
      %s947 = int_to_ptr.vmem [resolvable:$true] %s946
      %952 = dma.vmem_to_hbm [thread:$0]  %s947, 256, %s13, [#allocation4], 128, 128, 8
    $region85: #{tpu_custom_call.1} parent=1 // pred_fallthru
      _
    // Predicated region
    $region86: #{tpu_custom_call.1} parent=1 // pred_check
      _
    $region87: #{tpu_custom_call.1} parent=1 // pred_check_branch
      %954 = sbr.rel (0) target = $region89
    $region88: #{tpu_custom_call.1} parent=1 // pred_region
      %s956 = ssub.s32 256, 256
      %957 = vsyncadd [#allocation16], %s956
      %s958 = sshll.u32 [#allocation15], 4
      %s959 = int_to_ptr.vmem [resolvable:$true] %s958
      %964 = dma.vmem_to_hbm [thread:$0]  %s959, 256, %s14, [#allocation16], 128, 128, 8
    $region89: #{tpu_custom_call.1} parent=1 // pred_fallthru
      _
    // Predicated region
    $region90: #{tpu_custom_call.1} parent=1 // pred_check
      _
    $region91: #{tpu_custom_call.1} parent=1 // pred_check_branch
      %966 = sbr.rel (0) target = $region93
    $region92: #{tpu_custom_call.1} parent=1 // pred_region
      %s968 = ssub.s32 256, 256
      %969 = vsyncadd [#allocation16], %s968
      %s970 = sshll.u32 [#allocation17], 4
      %s971 = int_to_ptr.vmem [resolvable:$true] %s970
      %976 = dma.vmem_to_hbm [thread:$0]  %s971, 256, %s15, [#allocation16], 128, 128, 8
    $region93: #{tpu_custom_call.1} parent=1 // pred_fallthru
      _
    // Predicated region
    $region94: #{tpu_custom_call.1} parent=1 // pred_check
      _
    $region95: #{tpu_custom_call.1} parent=1 // pred_check_branch
      %978 = sbr.rel (0) target = $region97
    $region96: #{tpu_custom_call.1} parent=1 // pred_region
      %979 = dma.done [#allocation4], 256
    $region97: #{tpu_custom_call.1} parent=1 // pred_fallthru
      _
    // Predicated region
    $region98: #{tpu_custom_call.1} parent=1 // pred_check
      _
    $region99: #{tpu_custom_call.1} parent=1 // pred_check_branch
      %981 = sbr.rel (0) target = $region101
    $region100: #{tpu_custom_call.1} parent=1 // pred_region
      %982 = dma.done [#allocation16], 256
    $region101: #{tpu_custom_call.1} parent=1 // pred_fallthru
      _
    // Predicated region
    $region102: #{tpu_custom_call.1} parent=1 // pred_check
      _
    $region103: #{tpu_custom_call.1} parent=1 // pred_check_branch
      %984 = sbr.rel (0) target = $region105
    $region104: #{tpu_custom_call.1} parent=1 // pred_region
      %985 = dma.done [#allocation16], 256
    $region105: #{tpu_custom_call.1} parent=1 // pred_fallthru
      _
    %986 = vsyncpa [#allocation3], 1
    %987 = vsyncpa [#allocation6], 1
    %988 = vsyncpa [#allocation9], 1
    %989 = vsyncpa [#allocation12], 1
    %990 = vsyncpa [#allocation4], 1
    %991 = vsyncpa [#allocation16], 1

</llo_original>
